<compile_context>
chip_gen: v6e
topology: v6e:2x2x1
jax: 0.10.0
libtpu: 0.0.40
codegen_flags: <defaults>
</compile_context>

<pallas_src>
import jax
import jax.numpy as jnp
from jax.experimental import pallas as pl
from jax.experimental.pallas import tpu as pltpu


def _global_attn_dot_kernel(src_ref,     # [Bb, Tt, D]  query block
                            mem_ref,     # [Bb, S,  D]  memory-bank block
                            bias_ref,    # [Bb, 1,  S]  f32 additive length mask
                            w_ref,       # [2D, D]      pre-transposed linear_out weight
                            attn_h_ref,  # out: [Bb, Tt, D]
                            align_ref):  # out: [Bb, Tt, S]
    Bb, Tt, D = src_ref.shape

    q = src_ref[...]                                   # (Bb, Tt, D)
    m = mem_ref[...]                                   # (Bb, S,  D)

    # score(H_j, q) = H_j^T q  -> batched contraction over D (no transpose of m).
    scores = jnp.einsum('btd,bsd->bts', q, m,
                        preferred_element_type=jnp.float32)        # (Bb, Tt, S)

    # Vectorized sequence-length mask: single additive bias (0 valid / -1e30
    # padded), broadcast over the target dim. Finite value keeps fully-masked
    # rows NaN-free (uniform distribution instead of the reference's NaNs).
    scores = scores + bias_ref[...]

    # Softmax over the source dim (f32 math). One exp pass (EUP) + one
    # normalize-and-cast pass; exact reciprocal on the tiny (Bb,Tt,1) denom.
    mx = jnp.max(scores, axis=-1, keepdims=True)
    e = jnp.exp(scores - mx)
    denom = jnp.sum(e, axis=-1, keepdims=True)
    a = (e * (1.0 / denom)).astype(m.dtype)                        # (Bb, Tt, S)
    align_ref[...] = a.astype(align_ref.dtype)   # no-op cast when dtypes match

    # context c = bmm(align, memory_bank)
    c = jnp.einsum('bts,bsd->btd', a, m,
                   preferred_element_type=jnp.float32)             # (Bb, Tt, D)

    # linear_out([c, q]) with the pre-transposed (2D, D) weight, folded to
    # (Bb*Tt, D) rows for the MXU (Tt is sublane-aligned so the reshape is free).
    wd = w_ref.dtype
    c2 = c.reshape(Bb * Tt, D).astype(wd)
    q2 = q.reshape(Bb * Tt, D).astype(wd)
    if D % 128 == 0:
        # Lane-aligned concat -> single (Bb*Tt, 2D) @ (2D, D) dot: halves MXU
        # result-FIFO pops on v5e/v6e and drops an f32 add over Bb*Tt*D.
        h = jnp.dot(jnp.concatenate([c2, q2], axis=-1), w_ref[...],
                    preferred_element_type=jnp.float32)
    else:
        h = (jnp.dot(c2, w_ref[:D, :], preferred_element_type=jnp.float32)
             + jnp.dot(q2, w_ref[D:, :], preferred_element_type=jnp.float32))

    # 'dot'/'general' attention applies tanh to the projected output.
    attn_h_ref[...] = jnp.tanh(h).reshape(Bb, Tt, D).astype(attn_h_ref.dtype)


def _vmem_capacity_bytes():
    """Per-TensorCore VMEM capacity; conservative 64 MiB (v7x) fallback."""
    try:
        cap = getattr(pltpu.get_tpu_info(), "vmem_capacity_bytes", None)
        if cap:
            return int(cap)
    except Exception:
        pass
    return 64 * 1024 * 1024


def _step_vmem_bytes(bb, tt, S, D, in_b, out_b, w_b):
    """Per-grid-step VMEM: double-buffered I/O blocks + f32 temps + weight."""
    io = bb * (tt * D * in_b        # source block
               + S * D * in_b       # memory_bank block
               + S * 4              # mask-bias block (f32)
               + tt * D * out_b     # attn_h block
               + tt * S * out_b)    # align block
    f32_tmp = bb * (3 * tt * S + 4 * tt * D) * 4   # scores/e/a + c/h temporaries
    w = 2 * (2 * D) * D * w_b                       # weight (worst case 2 buffers)
    return 2 * io + f32_tmp + w


def _pick_blocks(B, T, S, D, in_b, out_b, w_b, budget):
    """Choose (Bb, Tt): fit VMEM budget; prefer >=2 grid steps (v7x megacore),
    then Bb*Tt >= 256 MXU rows, then the largest block (amortize the ~0.35us
    per-step grid overhead). Tt restricted to sublane multiples (or T itself)
    so blocks stay legal and the fold reshape is free."""
    sublane = {4: 8, 2: 16, 1: 32}.get(in_b, 8)
    t_cands = [t for t in range(1, T + 1)
               if T % t == 0 and (t % sublane == 0 or t == T)]
    b_cands = [b for b in range(1, B + 1) if B % b == 0]
    best, best_key = (1, t_cands[0]), None
    for tt in t_cands:
        for bb in b_cands:
            if _step_vmem_bytes(bb, tt, S, D, in_b, out_b, w_b) > budget:
                continue
            steps = (B // bb) * (T // tt)
            key = (steps >= 2, min(bb * tt, 256), bb * tt)
            if best_key is None or key > best_key:
                best_key, best = key, (bb, tt)
    return best


def global_attention_dot(source, memory_bank, memory_lengths, w_out):
    """Forward pass of GlobalAttention(dim, attn_type='dot', coverage=False).

    Returns (attn_h [B,T,D], align_vectors [B,T,S], None) like the PyTorch
    module (coverage vector is None when coverage=False).

    Notes:
      * matmuls run in the input dtype: pass bf16 source/memory_bank/w_out to
        use the bf16 MXU (essential on v5e); softmax/mask math stays f32.
      * rows with memory_lengths == 0 yield a uniform distribution (finite
        -1e30 mask bias) instead of the reference's NaNs.
      * for peak store/MXU efficiency pad S and D to multiples of 128 upstream
        (lane-dense align/attn_h stores, clean MXU tiles).
    """
    B, T, D = source.shape
    Bm, S, Dm = memory_bank.shape
    assert (Bm, Dm) == (B, D)
    assert w_out.shape == (D, 2 * D)

    # Pre-transpose the linear_out weight once in XLA (no in-kernel transpose);
    # row order matches torch.cat([c, source], dim=-1).
    w_t = jnp.transpose(w_out)                                     # (2D, D)

    # Additive length mask built once on the tiny (B, S) array (B*S elements
    # vs B*T*S per-step work in-kernel).
    valid = (jnp.arange(S, dtype=jnp.int32)[None, :]
             < memory_lengths.astype(jnp.int32)[:, None])
    bias = jnp.where(valid, jnp.float32(0.0), jnp.float32(-1e30))[:, None, :]

    in_b = jnp.dtype(source.dtype).itemsize
    out_b = in_b
    w_b = jnp.dtype(w_t.dtype).itemsize

    # Per-generation VMEM sizing: pick-budget ~cap/2, scoped limit ~3/4*cap
    # (48 MiB on v7x's 64 MiB/TC, 96 MiB on v5e/v6e's 128 MiB).
    cap = _vmem_capacity_bytes()
    budget = min(cap // 2, 64 * 1024 * 1024)
    vmem_limit = int(min(3 * cap // 4, 96 * 1024 * 1024))

    Bb, Tt = _pick_blocks(B, T, S, D, in_b, out_b, w_b, budget)
    grid = (B // Bb, T // Tt)

    flops = int(4 * B * T * S * D + 4 * B * T * D * D)
    transcendentals = int(B * T * S + B * T * D)
    bytes_accessed = int((source.size + memory_bank.size) * in_b
                         + bias.size * 4 + w_t.size * w_b
                         + (B * T * D + B * T * S) * out_b)

    def build(single_buffer_weight):
        # The weight's block index never changes; request a single pipeline
        # buffer so the spare double-buffer copy becomes VMEM headroom.
        w_kwargs = ({"pipeline_mode": pl.Buffered(1)}
                    if single_buffer_weight else {})
        grid_spec = pltpu.PrefetchScalarGridSpec(
            num_scalar_prefetch=0,
            grid=grid,
            in_specs=[
                pl.BlockSpec((Bb, Tt, D), lambda b, t: (b, t, 0)),   # source
                pl.BlockSpec((Bb, S, D), lambda b, t: (b, 0, 0)),    # memory_bank
                pl.BlockSpec((Bb, 1, S), lambda b, t: (b, 0, 0)),    # mask bias
                pl.BlockSpec((2 * D, D), lambda b, t: (0, 0), **w_kwargs),
            ],
            out_specs=[
                pl.BlockSpec((Bb, Tt, D), lambda b, t: (b, t, 0)),   # attn_h
                pl.BlockSpec((Bb, Tt, S), lambda b, t: (b, t, 0)),   # align
            ],
        )
        return pl.pallas_call(
            _global_attn_dot_kernel,
            out_shape=(jax.ShapeDtypeStruct((B, T, D), source.dtype),
                       jax.ShapeDtypeStruct((B, T, S), source.dtype)),
            grid_spec=grid_spec,
            compiler_params=pltpu.CompilerParams(
                dimension_semantics=("parallel", "parallel"),
                vmem_limit_bytes=vmem_limit),
            cost_estimate=pl.CostEstimate(
                flops=flops, transcendentals=transcendentals,
                bytes_accessed=bytes_accessed),
        )

    try:
        attn_h, align = build(True)(source, memory_bank, bias, w_t)
    except Exception:
        # Fallback if this jax build rejects pipeline_mode on this path; only
        # costs the spare weight buffer.
        attn_h, align = build(False)(source, memory_bank, bias, w_t)

    # TODO(synk): for S so long that even the (Bb=1, S, D) memory_bank block
    # exceeds VMEM, add an "arbitrary" S-tile grid axis with an online softmax
    # (running max/denom/ctx scratch) and a final align rescale.
    # TODO(synk): let callers skip the (B,T,S) align output when unused -- it
    # dominates HBM traffic once T >~ D.
    return attn_h, align, None   # coverage vector is None (coverage=False)


def _reference(source, memory_bank, memory_lengths, w_out):
    """Pure-JAX reference of the PyTorch forward ('dot', coverage=False)."""
    S = memory_bank.shape[1]
    align = jnp.einsum('btd,bsd->bts', source, memory_bank)
    mask = jnp.arange(S)[None, None, :] < memory_lengths[:, None, None]
    align = jnp.where(mask, align, -jnp.inf)
    a = jax.nn.softmax(align, axis=-1)
    c = jnp.einsum('bts,bsd->btd', a, memory_bank)
    concat = jnp.concatenate([c, source], axis=-1)             # (B, T, 2D)
    attn_h = jnp.tanh(concat @ w_out.T)
    return attn_h, a


if __name__ == "__main__":
    B, T, S, D = 2, 8, 16, 32

    key = jax.random.PRNGKey(0)
    k1, k2, k3 = jax.random.split(key, 3)
    source = jax.random.normal(k1, (B, T, D), dtype=jnp.float32)
    memory_bank = jax.random.normal(k2, (B, S, D), dtype=jnp.float32)
    # nn.Linear(dim*2, dim, bias=False).weight has shape (dim, 2*dim)
    w_out = (jax.random.normal(k3, (D, 2 * D), dtype=jnp.float32)
             * (1.0 / jnp.sqrt(2.0 * D)))
    memory_lengths = jnp.array([S, S - 4], dtype=jnp.int32)

    attn_h, align, cov = global_attention_dot(source, memory_bank,
                                              memory_lengths, w_out)
    jax.block_until_ready((attn_h, align))

    ref_h, ref_a = _reference(source, memory_bank, memory_lengths, w_out)
    assert jnp.allclose(attn_h, ref_h, atol=2e-4, rtol=2e-4)
    assert jnp.allclose(align, ref_a, atol=2e-4, rtol=2e-4)
    assert cov is None

    print("KERNEL_OK")
</pallas_src>

<mosaic_0001>
module attributes {stable_mosaic.version = 11 : i64} {
  func.func @_global_attn_dot_kernel(%arg0: i32, %arg1: i32, %arg2: memref<1x8x32xf32, #tpu.memory_space<vmem>>, %arg3: memref<1x16x32xf32, #tpu.memory_space<vmem>>, %arg4: memref<1x1x16xf32, #tpu.memory_space<vmem>>, %arg5: memref<64x32xf32, #tpu.memory_space<vmem>>, %arg6: memref<1x8x32xf32, #tpu.memory_space<vmem>>, %arg7: memref<1x8x16xf32, #tpu.memory_space<vmem>>) attributes {dimension_semantics = [#tpu.dimension_semantics<parallel>, #tpu.dimension_semantics<parallel>], iteration_bounds = array<i64: 2, 1>, scalar_prefetch = 0 : i64, scratch_operands = 0 : i64, tpu.core_type = #tpu.core_type<tc>, window_params = [{transform_indices = @transform_0, window_bounds = array<i64: 1, 8, 32>}, {transform_indices = @transform_1, window_bounds = array<i64: 1, 16, 32>}, {transform_indices = @transform_2, window_bounds = array<i64: 1, 1, 16>}, {pipeline_mode = #tpu.pipeline_mode<synchronous>, transform_indices = @transform_3, window_bounds = array<i64: 64, 32>}, {transform_indices = @transform_4, window_bounds = array<i64: 1, 8, 32>}, {transform_indices = @transform_5, window_bounds = array<i64: 1, 8, 16>}]} {
    %c0 = arith.constant 0 : index
    %c0_0 = arith.constant 0 : index
    %c0_1 = arith.constant 0 : index
    %0 = vector.load %arg2[%c0, %c0_0, %c0_1] : memref<1x8x32xf32, #tpu.memory_space<vmem>>, vector<1x8x32xf32>
    %c0_2 = arith.constant 0 : index
    %c0_3 = arith.constant 0 : index
    %c0_4 = arith.constant 0 : index
    %1 = vector.load %arg3[%c0_2, %c0_3, %c0_4] : memref<1x16x32xf32, #tpu.memory_space<vmem>>, vector<1x16x32xf32>
    "tpu.trace_start"() <{level = 10 : i32, message = "btd,bsd->bts"}> : () -> ()
    %cst = arith.constant dense<0.000000e+00> : vector<1x8x16xf32>
    %2 = tpu.matmul %0, %1, %cst {dimension_numbers = #tpu.dot_dimension_numbers<[2], [2], [1], [1], [0, 0, 0, 1, 1, 1], [0], [0]>} : vector<1x8x32xf32>, vector<1x16x32xf32>, vector<1x8x16xf32> -> vector<1x8x16xf32>
    "tpu.trace_stop"() : () -> ()
    %c0_5 = arith.constant 0 : index
    %c0_6 = arith.constant 0 : index
    %c0_7 = arith.constant 0 : index
    %3 = vector.load %arg4[%c0_5, %c0_6, %c0_7] : memref<1x1x16xf32, #tpu.memory_space<vmem>>, vector<1x1x16xf32>
    %4 = vector.broadcast %3 : vector<1x1x16xf32> to vector<1x8x16xf32>
    %5 = arith.addf %2, %4 : vector<1x8x16xf32>
    %cst_8 = arith.constant dense<0xFF800000> : vector<1x8xf32>
    %6 = vector.multi_reduction <maximumf>, %5, %cst_8 [2] : vector<1x8x16xf32> to vector<1x8xf32>
    %7 = vector.shape_cast %6 : vector<1x8xf32> to vector<1x8x1xf32>
    %8 = vector.broadcast %7 : vector<1x8x1xf32> to vector<1x8x16xf32>
    %9 = arith.subf %5, %8 : vector<1x8x16xf32>
    %10 = math.exp %9 : vector<1x8x16xf32>
    %cst_9 = arith.constant dense<0.000000e+00> : vector<1x8xf32>
    %11 = vector.multi_reduction <add>, %10, %cst_9 [2] : vector<1x8x16xf32> to vector<1x8xf32>
    %12 = vector.shape_cast %11 : vector<1x8xf32> to vector<1x8x1xf32>
    %cst_10 = arith.constant 1.000000e+00 : f32
    %13 = vector.broadcast %cst_10 : f32 to vector<1x8x1xf32>
    %14 = arith.divf %13, %12 : vector<1x8x1xf32>
    %15 = vector.broadcast %14 : vector<1x8x1xf32> to vector<1x8x16xf32>
    %16 = arith.mulf %10, %15 : vector<1x8x16xf32>
    %c0_11 = arith.constant 0 : index
    %c0_12 = arith.constant 0 : index
    %c0_13 = arith.constant 0 : index
    %17 = vector.load %arg7[%c0_11, %c0_12, %c0_13] : memref<1x8x16xf32, #tpu.memory_space<vmem>>, vector<1x8x16xf32>
    tpu.vector_store %arg7[%c0_11, %c0_12, %c0_13], %16 {strides = array<i32>} : memref<1x8x16xf32, #tpu.memory_space<vmem>>, vector<1x8x16xf32>,
    "tpu.trace_start"() <{level = 10 : i32, message = "bts,bsd->btd"}> : () -> ()
    %cst_14 = arith.constant dense<0.000000e+00> : vector<1x8x32xf32>
    %18 = tpu.matmul %16, %1, %cst_14 {dimension_numbers = #tpu.dot_dimension_numbers<[2], [1], [1], [2], [0, 0, 0, 1, 1, 2], [0], [0]>} : vector<1x8x16xf32>, vector<1x16x32xf32>, vector<1x8x32xf32> -> vector<1x8x32xf32>
    "tpu.trace_stop"() : () -> ()
    %19 = vector.shape_cast %18 : vector<1x8x32xf32> to vector<8x32xf32>
    %20 = vector.shape_cast %0 : vector<1x8x32xf32> to vector<8x32xf32>
    %c0_15 = arith.constant 0 : index
    %c0_16 = arith.constant 0 : index
    %21 = vector.load %arg5[%c0_15, %c0_16] : memref<64x32xf32, #tpu.memory_space<vmem>>, vector<32x32xf32>
    %cst_17 = arith.constant dense<0.000000e+00> : vector<8x32xf32>
    %22 = tpu.matmul %19, %21, %cst_17 {dimension_numbers = #tpu.dot_dimension_numbers<[1], [0], [0], [1], [0, 0, 1, 1], [], []>} : vector<8x32xf32>, vector<32x32xf32>, vector<8x32xf32> -> vector<8x32xf32>
    %c32 = arith.constant 32 : index
    %c0_18 = arith.constant 0 : index
    %23 = vector.load %arg5[%c32, %c0_18] : memref<64x32xf32, #tpu.memory_space<vmem>>, vector<32x32xf32>
    %cst_19 = arith.constant dense<0.000000e+00> : vector<8x32xf32>
    %24 = tpu.matmul %20, %23, %cst_19 {dimension_numbers = #tpu.dot_dimension_numbers<[1], [0], [0], [1], [0, 0, 1, 1], [], []>} : vector<8x32xf32>, vector<32x32xf32>, vector<8x32xf32> -> vector<8x32xf32>
    %25 = arith.addf %22, %24 : vector<8x32xf32>
    %26 = math.tanh %25 : vector<8x32xf32>
    %27 = vector.shape_cast %26 : vector<8x32xf32> to vector<1x8x32xf32>
    %c0_20 = arith.constant 0 : index
    %c0_21 = arith.constant 0 : index
    %c0_22 = arith.constant 0 : index
    %28 = vector.load %arg6[%c0_20, %c0_21, %c0_22] : memref<1x8x32xf32, #tpu.memory_space<vmem>>, vector<1x8x32xf32>
    tpu.vector_store %arg6[%c0_20, %c0_21, %c0_22], %27 {strides = array<i32>} : memref<1x8x32xf32, #tpu.memory_space<vmem>>, vector<1x8x32xf32>,
    return
  }
  func.func @transform_0(%arg0: i32, %arg1: i32) -> (i32, i32, i32) {
    %c0_i32 = arith.constant 0 : i32
    %c0_i32_0 = arith.constant 0 : i32
    return %arg0, %arg1, %c0_i32 : i32, i32, i32
  }
  func.func @transform_1(%arg0: i32, %arg1: i32) -> (i32, i32, i32) {
    %c0_i32 = arith.constant 0 : i32
    %c0_i32_0 = arith.constant 0 : i32
    %c0_i32_1 = arith.constant 0 : i32
    return %arg0, %c0_i32, %c0_i32_0 : i32, i32, i32
  }
  func.func @transform_2(%arg0: i32, %arg1: i32) -> (i32, i32, i32) {
    %c0_i32 = arith.constant 0 : i32
    %c0_i32_0 = arith.constant 0 : i32
    %c0_i32_1 = arith.constant 0 : i32
    return %arg0, %c0_i32, %c0_i32_0 : i32, i32, i32
  }
  func.func @transform_3(%arg0: i32, %arg1: i32) -> (i32, i32) {
    %c0_i32 = arith.constant 0 : i32
    %c0_i32_0 = arith.constant 0 : i32
    %c0_i32_1 = arith.constant 0 : i32
    return %c0_i32, %c0_i32_0 : i32, i32
  }
  func.func @transform_4(%arg0: i32, %arg1: i32) -> (i32, i32, i32) {
    %c0_i32 = arith.constant 0 : i32
    %c0_i32_0 = arith.constant 0 : i32
    return %arg0, %arg1, %c0_i32 : i32, i32, i32
  }
  func.func @transform_5(%arg0: i32, %arg1: i32) -> (i32, i32, i32) {
    %c0_i32 = arith.constant 0 : i32
    %c0_i32_0 = arith.constant 0 : i32
    return %arg0, %arg1, %c0_i32 : i32, i32, i32
  }
}

module attributes {stable_mosaic.version = 11 : i64} {
  func.func @_global_attn_dot_kernel(%arg0: i32, %arg1: i32, %arg2: memref<1x8x32xf32, #tpu.memory_space<vmem>>, %arg3: memref<1x16x32xf32, #tpu.memory_space<vmem>>, %arg4: memref<1x1x16xf32, #tpu.memory_space<vmem>>, %arg5: memref<64x32xf32, #tpu.memory_space<vmem>>, %arg6: memref<1x8x32xf32, #tpu.memory_space<vmem>>, %arg7: memref<1x8x16xf32, #tpu.memory_space<vmem>>) attributes {dimension_semantics = [#tpu.dimension_semantics<parallel>, #tpu.dimension_semantics<parallel>], iteration_bounds = array<i64: 2, 1>, scalar_prefetch = 0 : i64, scratch_operands = 0 : i64, tpu.core_type = #tpu.core_type<tc>, window_params = [{transform_indices = @transform_0, window_bounds = array<i64: 1, 8, 32>}, {transform_indices = @transform_1, window_bounds = array<i64: 1, 16, 32>}, {transform_indices = @transform_2, window_bounds = array<i64: 1, 1, 16>}, {pipeline_mode = #tpu.pipeline_mode<synchronous>, transform_indices = @transform_3, window_bounds = array<i64: 64, 32>}, {transform_indices = @transform_4, window_bounds = array<i64: 1, 8, 32>}, {transform_indices = @transform_5, window_bounds = array<i64: 1, 8, 16>}]} {
    %c0 = arith.constant 0 : index
    %c0_0 = arith.constant 0 : index
    %c0_1 = arith.constant 0 : index
    %0 = vector.load %arg2[%c0, %c0_0, %c0_1] : memref<1x8x32xf32, #tpu.memory_space<vmem>>, vector<1x8x32xf32>
    %c0_2 = arith.constant 0 : index
    %c0_3 = arith.constant 0 : index
    %c0_4 = arith.constant 0 : index
    %1 = vector.load %arg3[%c0_2, %c0_3, %c0_4] : memref<1x16x32xf32, #tpu.memory_space<vmem>>, vector<1x16x32xf32>
    "tpu.trace_start"() <{level = 10 : i32, message = "btd,bsd->bts"}> : () -> ()
    %cst = arith.constant dense<0.000000e+00> : vector<1x8x16xf32>
    %2 = tpu.matmul %0, %1, %cst {dimension_numbers = #tpu.dot_dimension_numbers<[2], [2], [1], [1], [0, 0, 0, 1, 1, 1], [0], [0]>} : vector<1x8x32xf32>, vector<1x16x32xf32>, vector<1x8x16xf32> -> vector<1x8x16xf32>
    "tpu.trace_stop"() : () -> ()
    %c0_5 = arith.constant 0 : index
    %c0_6 = arith.constant 0 : index
    %c0_7 = arith.constant 0 : index
    %3 = vector.load %arg4[%c0_5, %c0_6, %c0_7] : memref<1x1x16xf32, #tpu.memory_space<vmem>>, vector<1x1x16xf32>
    %4 = vector.broadcast %3 : vector<1x1x16xf32> to vector<1x8x16xf32>
    %5 = arith.addf %2, %4 : vector<1x8x16xf32>
    %cst_8 = arith.constant dense<0xFF800000> : vector<1x8xf32>
    %6 = vector.multi_reduction <maximumf>, %5, %cst_8 [2] : vector<1x8x16xf32> to vector<1x8xf32>
    %7 = vector.shape_cast %6 : vector<1x8xf32> to vector<1x8x1xf32>
    %8 = vector.broadcast %7 : vector<1x8x1xf32> to vector<1x8x16xf32>
    %9 = arith.subf %5, %8 : vector<1x8x16xf32>
    %10 = math.exp %9 : vector<1x8x16xf32>
    %cst_9 = arith.constant dense<0.000000e+00> : vector<1x8xf32>
    %11 = vector.multi_reduction <add>, %10, %cst_9 [2] : vector<1x8x16xf32> to vector<1x8xf32>
    %12 = vector.shape_cast %11 : vector<1x8xf32> to vector<1x8x1xf32>
    %cst_10 = arith.constant 1.000000e+00 : f32
    %13 = vector.broadcast %cst_10 : f32 to vector<1x8x1xf32>
    %14 = arith.divf %13, %12 : vector<1x8x1xf32>
    %15 = vector.broadcast %14 : vector<1x8x1xf32> to vector<1x8x16xf32>
    %16 = arith.mulf %10, %15 : vector<1x8x16xf32>
    %c0_11 = arith.constant 0 : index
    %c0_12 = arith.constant 0 : index
    %c0_13 = arith.constant 0 : index
    %17 = vector.load %arg7[%c0_11, %c0_12, %c0_13] : memref<1x8x16xf32, #tpu.memory_space<vmem>>, vector<1x8x16xf32>
    tpu.vector_store %arg7[%c0_11, %c0_12, %c0_13], %16 {strides = array<i32>} : memref<1x8x16xf32, #tpu.memory_space<vmem>>, vector<1x8x16xf32>,
    "tpu.trace_start"() <{level = 10 : i32, message = "bts,bsd->btd"}> : () -> ()
    %cst_14 = arith.constant dense<0.000000e+00> : vector<1x8x32xf32>
    %18 = tpu.matmul %16, %1, %cst_14 {dimension_numbers = #tpu.dot_dimension_numbers<[2], [1], [1], [2], [0, 0, 0, 1, 1, 2], [0], [0]>} : vector<1x8x16xf32>, vector<1x16x32xf32>, vector<1x8x32xf32> -> vector<1x8x32xf32>
    "tpu.trace_stop"() : () -> ()
    %19 = vector.shape_cast %18 : vector<1x8x32xf32> to vector<8x32xf32>
    %20 = vector.shape_cast %0 : vector<1x8x32xf32> to vector<8x32xf32>
    %c0_15 = arith.constant 0 : index
    %c0_16 = arith.constant 0 : index
    %21 = vector.load %arg5[%c0_15, %c0_16] : memref<64x32xf32, #tpu.memory_space<vmem>>, vector<32x32xf32>
    %cst_17 = arith.constant dense<0.000000e+00> : vector<8x32xf32>
    %22 = tpu.matmul %19, %21, %cst_17 {dimension_numbers = #tpu.dot_dimension_numbers<[1], [0], [0], [1], [0, 0, 1, 1], [], []>} : vector<8x32xf32>, vector<32x32xf32>, vector<8x32xf32> -> vector<8x32xf32>
    %c32 = arith.constant 32 : index
    %c0_18 = arith.constant 0 : index
    %23 = vector.load %arg5[%c32, %c0_18] : memref<64x32xf32, #tpu.memory_space<vmem>>, vector<32x32xf32>
    %cst_19 = arith.constant dense<0.000000e+00> : vector<8x32xf32>
    %24 = tpu.matmul %20, %23, %cst_19 {dimension_numbers = #tpu.dot_dimension_numbers<[1], [0], [0], [1], [0, 0, 1, 1], [], []>} : vector<8x32xf32>, vector<32x32xf32>, vector<8x32xf32> -> vector<8x32xf32>
    %25 = arith.addf %22, %24 : vector<8x32xf32>
    %26 = math.tanh %25 : vector<8x32xf32>
    %27 = vector.shape_cast %26 : vector<8x32xf32> to vector<1x8x32xf32>
    %c0_20 = arith.constant 0 : index
    %c0_21 = arith.constant 0 : index
    %c0_22 = arith.constant 0 : index
    %28 = vector.load %arg6[%c0_20, %c0_21, %c0_22] : memref<1x8x32xf32, #tpu.memory_space<vmem>>, vector<1x8x32xf32>
    tpu.vector_store %arg6[%c0_20, %c0_21, %c0_22], %27 {strides = array<i32>} : memref<1x8x32xf32, #tpu.memory_space<vmem>>, vector<1x8x32xf32>,
    return
  }
  func.func @transform_0(%arg0: i32, %arg1: i32) -> (i32, i32, i32) {
    %c0_i32 = arith.constant 0 : i32
    %c0_i32_0 = arith.constant 0 : i32
    return %arg0, %arg1, %c0_i32 : i32, i32, i32
  }
  func.func @transform_1(%arg0: i32, %arg1: i32) -> (i32, i32, i32) {
    %c0_i32 = arith.constant 0 : i32
    %c0_i32_0 = arith.constant 0 : i32
    %c0_i32_1 = arith.constant 0 : i32
    return %arg0, %c0_i32, %c0_i32_0 : i32, i32, i32
  }
  func.func @transform_2(%arg0: i32, %arg1: i32) -> (i32, i32, i32) {
    %c0_i32 = arith.constant 0 : i32
    %c0_i32_0 = arith.constant 0 : i32
    %c0_i32_1 = arith.constant 0 : i32
    return %arg0, %c0_i32, %c0_i32_0 : i32, i32, i32
  }
  func.func @transform_3(%arg0: i32, %arg1: i32) -> (i32, i32) {
    %c0_i32 = arith.constant 0 : i32
    %c0_i32_0 = arith.constant 0 : i32
    %c0_i32_1 = arith.constant 0 : i32
    return %c0_i32, %c0_i32_0 : i32, i32
  }
  func.func @transform_4(%arg0: i32, %arg1: i32) -> (i32, i32, i32) {
    %c0_i32 = arith.constant 0 : i32
    %c0_i32_0 = arith.constant 0 : i32
    return %arg0, %arg1, %c0_i32 : i32, i32, i32
  }
  func.func @transform_5(%arg0: i32, %arg1: i32) -> (i32, i32, i32) {
    %c0_i32 = arith.constant 0 : i32
    %c0_i32_0 = arith.constant 0 : i32
    return %arg0, %arg1, %c0_i32 : i32, i32, i32
  }
}

</mosaic_0001>

<llo_original>
// kernel: tpu_custom_call.1
$region0: #{tpu_custom_call.1}
  #allocation0 [shape = 'u32[]', space=smem, size = 0x4, offset = 0x4, fixed_abs, tag = 'smem constant byte address 0x4 - core index']
  #allocation1 [shape = 'u32[144,128]{1,0:T(1,128)}', space=vmem, size = 0x12000, scoped, tag = 'internal scratch']
  %s0 = inlined_call_operand.vmem [shape: f32[2,8,32], index: 0, kind: input, shape index: {}]
  %s1 = inlined_call_operand.vmem [shape: f32[2,16,32], index: 1, kind: input, shape index: {}]
  %s2 = inlined_call_operand.vmem [shape: f32[2,1,16], index: 2, kind: input, shape index: {}]
  %s3 = inlined_call_operand.vmem [shape: f32[64,32], index: 3, kind: input, shape index: {}]
  %s4 = inlined_call_operand.hbm [shape: f32[2,8,32], index: 4, kind: output, shape index: {0}]
  %s5 = inlined_call_operand.hbm [shape: f32[2,8,16], index: 5, kind: output, shape index: {1}]
  %6 = xla_tuple %s4, %s5
  %s7 = sld [smem:[#allocation0]]
  $region57: #{tpu_custom_call.1} parent=0
    _
  %s9 = ssub.s32 1, %s7
  %s10 = scalar_select 0, %s9, %s7
  $region1: #{tpu_custom_call.1} parent=0
    #allocation2 [shape = 'u8[8192]{0}', space=vmem, size = 0x2000, scoped, tag = 'output window, operand 0']
    #allocation3 [shape = 's32[2]{0}', space=sflag, size = 0x8, scoped, tag = 'scoped memory for tpu_custom_call.1']
    #allocation4 [shape = 'u8[8192]{0}', space=vmem, size = 0x2000, scoped, tag = 'output window, operand 1']
    #allocation5 [shape = 's32[2]{0}', space=sflag, size = 0x8, scoped, tag = 'scoped memory for tpu_custom_call.1']
    %11 = vsyncpa [#allocation3], 0
    %s12 = scalar_lea.sflag [#allocation3], 1
    %13 = vsyncpa %s12, 0
    %14 = vsyncpa [#allocation5], 0
    %s15 = scalar_lea.sflag [#allocation5], 1
    %16 = vsyncpa %s15, 0
    loop: start=0, step=1, limit=4
    $region2: #{tpu_custom_call.1} parent=1 // loop_pre_header
      _
    $region3: #{tpu_custom_call.1} parent=1 // loop_header
      %s18 = sphi 0, %s22
      %p19 = scmp.ge.s32.totalorder %s18, 4
      %s25 = sphi 0, %s37
      %s26 = sphi 0, %s33
      %s27 = sphi 0, %s25
      %s28 = sphi 0, %s26
      %s29 = sphi 0, %s27
      %s30 = sphi 0, %s28
      %s42 = sphi 0, %s44
      %s45 = sphi 0, %s42
      %s46 = sphi 0, %s45
      %s62 = sphi 0, %s46
      %s68 = sphi 0, %s70
      %s71 = sphi 0, %s68
      %s72 = sphi 0, %s71
      %s88 = sphi 0, %s72
      %s94 = sphi 0, %s96
      %s97 = sphi 0, %s94
      %s98 = sphi 0, %s97
      %s114 = sphi 0, %s98
      %s118 = sphi 0, %s118
      %s120 = sphi 0, %s118
      %s121 = sphi 0, %s120
      %s135 = sphi 0, %s121
      %s143 = sphi 0, %s145
      %s146 = sphi 0, %s143
      %s147 = sphi 0, %s146
      %s163 = sphi 0, %s147
      %s171 = sphi 0, %s173
      %s174 = sphi 0, %s171
      %s175 = sphi 0, %s174
      %s191 = sphi 0, %s175
    $region4: #{tpu_custom_call.1} parent=1 // loop_header_branch
      %21 = sbr.rel (%p19) target = $region8
    $region5: #{tpu_custom_call.1} parent=1 // loop_body
      %s23 = ssub.s32 %s18, 1
      %s24 = ssub.s32 %s18, 2
      %s31 = sadd.s32 1, %s26
      %p32 = scmp.ge.s32.totalorder %s31, 1
      %s33 = scalar_select %p32, 0, %s31
      %s34 = sadd.s32 1, %s25
      %s35 = scalar_select %p32, %s34, %s25
      %p36 = scmp.ge.s32.totalorder %s35, 2
      %s37 = scalar_select %p36, 0, %s35
      %s38 = ssub.s32 %s25, %s37
      %s39 = ssub.s32 %s26, %s33
      %s40 = sor.u32 %s38, %s39
      %p41 = scmp.eq.s32.totalorder %s40, 0
      %s43 = sadd.s32 %s42, 1
      %s44 = scalar_select %p41, %s42, %s43
      %p47 = pneg %p41
      %p48 = scmp.eq.s32.totalorder %s18, 1
      %p49 = por %p47, %p48
      %p50 = scmp.ne.s32.totalorder %s42, %s45
      %p51 = scmp.eq.s32.totalorder %s18, 0
      %p52 = por %p50, %p51
      %p53 = scmp.ne.s32.totalorder %s42, %s45
      %p54 = scmp.eq.s32.totalorder %s23, 1
      %p55 = por %p53, %p54
      %p56 = scmp.ne.s32.totalorder %s45, %s46
      %p57 = scmp.eq.s32.totalorder %s23, 0
      %p58 = por %p56, %p57
      %p59 = scmp.ne.s32.totalorder %s45, %s46
      %p60 = scmp.eq.s32.totalorder %s24, 1
      %p61 = por %p59, %p60
      %p63 = scmp.ne.s32.totalorder %s46, %s62
      %p64 = scmp.eq.s32.totalorder %s24, 0
      %p65 = por %p63, %p64
      %s66 = ssub.s32 %s25, %s37
      %p67 = scmp.eq.s32.totalorder %s66, 0
      %s69 = sadd.s32 %s68, 1
      %s70 = scalar_select %p67, %s68, %s69
      %p73 = pneg %p67
      %p74 = scmp.eq.s32.totalorder %s18, 1
      %p75 = por %p73, %p74
      %p76 = scmp.ne.s32.totalorder %s68, %s71
      %p77 = scmp.eq.s32.totalorder %s18, 0
      %p78 = por %p76, %p77
      %p79 = scmp.ne.s32.totalorder %s68, %s71
      %p80 = scmp.eq.s32.totalorder %s23, 1
      %p81 = por %p79, %p80
      %p82 = scmp.ne.s32.totalorder %s71, %s72
      %p83 = scmp.eq.s32.totalorder %s23, 0
      %p84 = por %p82, %p83
      %p85 = scmp.ne.s32.totalorder %s71, %s72
      %p86 = scmp.eq.s32.totalorder %s24, 1
      %p87 = por %p85, %p86
      %p89 = scmp.ne.s32.totalorder %s72, %s88
      %p90 = scmp.eq.s32.totalorder %s24, 0
      %p91 = por %p89, %p90
      %s92 = ssub.s32 %s25, %s37
      %p93 = scmp.eq.s32.totalorder %s92, 0
      %s95 = sadd.s32 %s94, 1
      %s96 = scalar_select %p93, %s94, %s95
      %p99 = pneg %p93
      %p100 = scmp.eq.s32.totalorder %s18, 1
      %p101 = por %p99, %p100
      %p102 = scmp.ne.s32.totalorder %s94, %s97
      %p103 = scmp.eq.s32.totalorder %s18, 0
      %p104 = por %p102, %p103
      %p105 = scmp.ne.s32.totalorder %s94, %s97
      %p106 = scmp.eq.s32.totalorder %s23, 1
      %p107 = por %p105, %p106
      %p108 = scmp.ne.s32.totalorder %s97, %s98
      %p109 = scmp.eq.s32.totalorder %s23, 0
      %p110 = por %p108, %p109
      %p111 = scmp.ne.s32.totalorder %s97, %s98
      %p112 = scmp.eq.s32.totalorder %s24, 1
      %p113 = por %p111, %p112
      %p115 = scmp.ne.s32.totalorder %s98, %s114
      %p116 = scmp.eq.s32.totalorder %s24, 0
      %p117 = por %p115, %p116
      %s119 = sadd.s32 %s118, 1
      %p122 = scmp.eq.s32.totalorder %s18, 1
      %p123 = scmp.ne.s32.totalorder %s118, %s120
      %p124 = scmp.eq.s32.totalorder %s18, 0
      %p125 = por %p123, %p124
      %p126 = scmp.ne.s32.totalorder %s118, %s120
      %p127 = scmp.eq.s32.totalorder %s23, 1
      %p128 = por %p126, %p127
      %p129 = scmp.ne.s32.totalorder %s120, %s121
      %p130 = scmp.eq.s32.totalorder %s23, 0
      %p131 = por %p129, %p130
      %p132 = scmp.ne.s32.totalorder %s120, %s121
      %p133 = scmp.eq.s32.totalorder %s24, 1
      %p134 = por %p132, %p133
      %p136 = scmp.ne.s32.totalorder %s121, %s135
      %p137 = scmp.eq.s32.totalorder %s24, 0
      %p138 = por %p136, %p137
      %s139 = ssub.s32 %s25, %s37
      %s140 = ssub.s32 %s26, %s33
      %s141 = sor.u32 %s139, %s140
      %p142 = scmp.eq.s32.totalorder %s141, 0
      %s144 = sadd.s32 %s143, 1
      %s145 = scalar_select %p142, %s143, %s144
      %p148 = pneg %p142
      %p149 = scmp.eq.s32.totalorder %s18, 1
      %p150 = por %p148, %p149
      %p151 = scmp.ne.s32.totalorder %s143, %s146
      %p152 = scmp.eq.s32.totalorder %s18, 0
      %p153 = por %p151, %p152
      %p154 = scmp.ne.s32.totalorder %s143, %s146
      %p155 = scmp.eq.s32.totalorder %s23, 1
      %p156 = por %p154, %p155
      %p157 = scmp.ne.s32.totalorder %s146, %s147
      %p158 = scmp.eq.s32.totalorder %s23, 0
      %p159 = por %p157, %p158
      %p160 = scmp.ne.s32.totalorder %s146, %s147
      %p161 = scmp.eq.s32.totalorder %s24, 1
      %p162 = por %p160, %p161
      %p164 = scmp.ne.s32.totalorder %s147, %s163
      %p165 = scmp.eq.s32.totalorder %s24, 0
      %p166 = por %p164, %p165
      %s167 = ssub.s32 %s25, %s37
      %s168 = ssub.s32 %s26, %s33
      %s169 = sor.u32 %s167, %s168
      %p170 = scmp.eq.s32.totalorder %s169, 0
      %s172 = sadd.s32 %s171, 1
      %s173 = scalar_select %p170, %s171, %s172
      %p176 = pneg %p170
      %p177 = scmp.eq.s32.totalorder %s18, 1
      %p178 = por %p176, %p177
      %p179 = scmp.ne.s32.totalorder %s171, %s174
      %p180 = scmp.eq.s32.totalorder %s18, 0
      %p181 = por %p179, %p180
      %p182 = scmp.ne.s32.totalorder %s171, %s174
      %p183 = scmp.eq.s32.totalorder %s23, 1
      %p184 = por %p182, %p183
      %p185 = scmp.ne.s32.totalorder %s174, %s175
      %p186 = scmp.eq.s32.totalorder %s23, 0
      %p187 = por %p185, %p186
      %p188 = scmp.ne.s32.totalorder %s174, %s175
      %p189 = scmp.eq.s32.totalorder %s24, 1
      %p190 = por %p188, %p189
      %p192 = scmp.ne.s32.totalorder %s175, %s191
      %p193 = scmp.eq.s32.totalorder %s24, 0
      %p194 = por %p192, %p193
      %p195 = scmp.le.s32.totalorder 1, %s18
      %p196 = scmp.lt.s32.totalorder %s18, 3
      %p197 = pnand %p195, %p196
      %p198 = pneg %p197
      // Predicated region
      $region9: #{tpu_custom_call.1} parent=5 // pred_check
        _
      $region10: #{tpu_custom_call.1} parent=5 // pred_check_branch
        %200 = sbr.rel (%p197) target = $region12
      $region11: #{tpu_custom_call.1} parent=5 // pred_region
        %s201 = ssub.s32 %s18, 1
        // Predicated region
        $region13: #{tpu_custom_call.1} parent=11 // pred_check
          %p202 = pneg %p131
        $region14: #{tpu_custom_call.1} parent=11 // pred_check_branch
          %204 = sbr.rel (%p202) target = $region16
        $region15: #{tpu_custom_call.1} parent=11 // pred_region
          _
        $region16: #{tpu_custom_call.1} parent=11 // pred_fallthru
          _
      $region12: #{tpu_custom_call.1} parent=5 // pred_fallthru
        _
      %p205 = scmp.lt.s32.totalorder %s18, 2
      // Predicated region
      $region17: #{tpu_custom_call.1} parent=5 // pred_check
        %p206 = pneg %p205
      $region18: #{tpu_custom_call.1} parent=5 // pred_check_branch
        %208 = sbr.rel (%p206) target = $region20
      $region19: #{tpu_custom_call.1} parent=5 // pred_region
        // Predicated region
        $region21: #{tpu_custom_call.1} parent=19 // pred_check
          %p209 = pneg %p52
        $region22: #{tpu_custom_call.1} parent=19 // pred_check_branch
          %211 = sbr.rel (%p209) target = $region24
        $region23: #{tpu_custom_call.1} parent=19 // pred_region
          %p212 = scmp.lt.s32.totalorder %s25, 1
          %s213 = scalar_select %p212, %s25, 1
          %p214 = scmp.lt.s32.totalorder %s26, 0
          %s215 = scalar_select %p214, %s26, 0
          %s216 = sadd.s32 %s215, %s213
          %s217 = smul.addr %s216, 8
          %s218 = scalar_lea.vmem %s0, %s217
        $region24: #{tpu_custom_call.1} parent=19 // pred_fallthru
          _
        // Predicated region
        $region25: #{tpu_custom_call.1} parent=19 // pred_check
          %p219 = pneg %p78
        $region26: #{tpu_custom_call.1} parent=19 // pred_check_branch
          %221 = sbr.rel (%p219) target = $region28
        $region27: #{tpu_custom_call.1} parent=19 // pred_region
          %p222 = scmp.lt.s32.totalorder %s25, 1
          %s223 = scalar_select %p222, %s25, 1
          %s224 = smul.addr %s223, 2
          %s225 = smul.addr %s224, 8
          %s226 = scalar_lea.vmem %s1, %s225
        $region28: #{tpu_custom_call.1} parent=19 // pred_fallthru
          _
        // Predicated region
        $region29: #{tpu_custom_call.1} parent=19 // pred_check
          %p227 = pneg %p104
        $region30: #{tpu_custom_call.1} parent=19 // pred_check_branch
          %229 = sbr.rel (%p227) target = $region32
        $region31: #{tpu_custom_call.1} parent=19 // pred_region
          %p230 = scmp.lt.s32.totalorder %s25, 1
          %s231 = scalar_select %p230, %s25, 1
          %s232 = scalar_lea.vmem %s2, %s231
        $region32: #{tpu_custom_call.1} parent=19 // pred_fallthru
          _
      $region20: #{tpu_custom_call.1} parent=5 // pred_fallthru
        _
      %p233 = scmp.le.s32.totalorder 1, %s18
      %p234 = scmp.lt.s32.totalorder %s18, 3
      %p235 = pnand %p233, %p234
      %p236 = pneg %p235
      // Predicated region
      $region33: #{tpu_custom_call.1} parent=5 // pred_check
        _
      $region34: #{tpu_custom_call.1} parent=5 // pred_check_branch
        %238 = sbr.rel (%p235) target = $region36
      $region35: #{tpu_custom_call.1} parent=5 // pred_region
        %s239 = ssub.s32 %s18, 1
        %p240 = scmp.lt.s32.totalorder %s27, 1
        %s241 = scalar_select %p240, %s27, 1
        %p242 = scmp.lt.s32.totalorder %s28, 0
        %s243 = scalar_select %p242, %s28, 0
        %s244 = sadd.s32 %s243, %s241
        %s245 = smul.addr %s244, 8
        %s246 = scalar_lea.vmem %s0, %s245
        %p247 = pneg %p58
        %p248 = pneg %p55
        %p249 = scmp.lt.s32.totalorder %s27, 1
        %s250 = scalar_select %p249, %s27, 1
        %s251 = smul.addr %s250, 2
        %s252 = smul.addr %s251, 8
        %s253 = scalar_lea.vmem %s1, %s252
        %p254 = pneg %p84
        %p255 = pneg %p81
        %p256 = scmp.lt.s32.totalorder %s27, 1
        %s257 = scalar_select %p256, %s27, 1
        %s258 = scalar_lea.vmem %s2, %s257
        %p259 = pneg %p110
        %p260 = pneg %p107
        %p261 = pneg %p131
        %p262 = pneg %p128
        %p263 = pneg %p159
        %p264 = pneg %p156
        %s265 = sand.u32 %s146, 1
        %s266 = scalar_lea.sflag [#allocation3], %s265
        %s267 = sand.u32 %s146, 1
        %s268 = smul.addr %s267, 8
        %s269 = scalar_lea.vmem [#allocation2], %s268
        %p270 = pneg %p187
        %p271 = pneg %p184
        %s272 = sand.u32 %s174, 1
        %s273 = scalar_lea.sflag [#allocation5], %s272
        %s274 = sand.u32 %s174, 1
        %s275 = smul.addr %s274, 8
        %s276 = scalar_lea.vmem [#allocation4], %s275
        %p277 = scmp.lt.s32.totalorder %s27, 1
        %s278 = scalar_select %p277, %s27, 1
        %p279 = scmp.lt.s32.totalorder %s28, 0
        %s280 = scalar_select %p279, %s28, 0
        %s281 = sadd.s32 %s280, %s278
        %s282 = smul.addr %s281, 8
        %s283 = scalar_lea.vmem %s0, %s282
        %p284 = scmp.lt.s32.totalorder %s27, 1
        %s285 = scalar_select %p284, %s27, 1
        %s286 = smul.addr %s285, 2
        %s287 = smul.addr %s286, 8
        %s288 = scalar_lea.vmem %s1, %s287
        %p289 = scmp.lt.s32.totalorder %s27, 1
        %s290 = scalar_select %p289, %s27, 1
        %s291 = scalar_lea.vmem %s2, %s290
        %v292 = vld [vmem:[%s283] sm:$0xff]
        %v293 = vld [vmem:[%s288] sm:$0xff]
        %v294 = vld [vmem:[%s288 + $0x8] sm:$0xff]
        %v295 = vld [vmem:[%s291] sm:$0x1]
        %v297 = vlaneseq
        %v298 = vshrl.u32 %v297, 7
        %v299 = vsub.s32 0, %v298
        %v300 = vrot.slane %v295, %v299
        %vm302 = vcmask 261120
        %v304 = vsel %vm302, %v292, 0
        %v307 = vsel %vm302, %v293, 0
        %v310 = vsel %vm302, %v294, 0
        %312 = vmatprep.subr.mxu0 0.0
        %313 = vmatpush1.xpose.msra.mxu0 0.0
        %314 = vmatprep.subr.mxu0 0.0
        %315 = vmatpush1.xpose.msra.mxu0 0.0
        %316 = vmatprep.subr.mxu0 0.0
        %317 = vmatpush1.xpose.msra.mxu0 0.0
        %318 = vmatprep.subr.mxu0 0.0
        %319 = vmatpush1.xpose.msra.mxu0 0.0
        %320 = vmatprep.subr.mxu0 0.0
        %321 = vmatpush1.xpose.msra.mxu0 0.0
        %322 = vmatprep.subr.mxu0 0.0
        %323 = vmatpush1.xpose.msra.mxu0 0.0
        %324 = vmatprep.subr.mxu0 0.0
        %325 = vmatpush1.xpose.msra.mxu0 0.0
        %326 = vmatprep.subr.mxu0 0.0
        %327 = vmatpush1.xpose.msra.mxu0 0.0
        %328 = vmatprep.subr.mxu0 0.0
        %329 = vmatpush1.xpose.msra.mxu0 0.0
        %330 = vmatprep.subr.mxu0 0.0
        %331 = vmatpush1.xpose.msra.mxu0 0.0
        %332 = vmatprep.subr.mxu0 0.0
        %333 = vmatpush1.xpose.msra.mxu0 0.0
        %334 = vmatprep.subr.mxu0 0.0
        %335 = vmatpush1.xpose.msra.mxu0 0.0
        %336 = vmatprep.subr.mxu0 0.0
        %337 = vmatpush1.xpose.msra.mxu0 0.0
        %338 = vmatprep.subr.mxu0 0.0
        %339 = vmatpush1.xpose.msra.mxu0 0.0
        %340 = vmatprep.subr.mxu0 0.0
        %341 = vmatpush1.xpose.msra.mxu0 %v310
        %342 = vmatprep.subr.mxu0 0.0
        %343 = vmatpush1.xpose.msra.mxu0 %v307
        %344 = vmatprep.subr.mxu0 0.0
        %345 = vmatpush2.xpose.msra.mxu0 0.0
        %346 = vmatprep.subr.mxu0 0.0
        %347 = vmatpush2.xpose.msra.mxu0 0.0
        %348 = vmatprep.subr.mxu0 0.0
        %349 = vmatpush2.xpose.msra.mxu0 0.0
        %350 = vmatprep.subr.mxu0 0.0
        %351 = vmatpush2.xpose.msra.mxu0 0.0
        %352 = vmatprep.subr.mxu0 0.0
        %353 = vmatpush2.xpose.msra.mxu0 0.0
        %354 = vmatprep.subr.mxu0 0.0
        %355 = vmatpush2.xpose.msra.mxu0 0.0
        %356 = vmatprep.subr.mxu0 0.0
        %357 = vmatpush2.xpose.msra.mxu0 0.0
        %358 = vmatprep.subr.mxu0 0.0
        %359 = vmatpush2.xpose.msra.mxu0 0.0
        %360 = vmatprep.subr.mxu0 0.0
        %361 = vmatpush2.xpose.msra.mxu0 0.0
        %362 = vmatprep.subr.mxu0 0.0
        %363 = vmatpush2.xpose.msra.mxu0 0.0
        %364 = vmatprep.subr.mxu0 0.0
        %365 = vmatpush2.xpose.msra.mxu0 0.0
        %366 = vmatprep.subr.mxu0 0.0
        %367 = vmatpush2.xpose.msra.mxu0 0.0
        %368 = vmatprep.subr.mxu0 0.0
        %369 = vmatpush2.xpose.msra.mxu0 0.0
        %370 = vmatprep.subr.mxu0 0.0
        %371 = vmatpush2.xpose.msra.mxu0 0.0
        %372 = vmatprep.subr.mxu0 0.0
        %373 = vmatpush2.xpose.msra.mxu0 0.0
        %374 = vmatprep.subr.mxu0 0.0
        %375 = vmatpush2.xpose.msra.mxu0 0.0
        %376 = vmatprep.mubr.f32.mxu0 0.0
        %377 = vmatmul.mubr.f32.gmra.mxu0 %v304
        %v378 = vpop.f32.mrf.mxu0
        %v379 = vadd.f32 %v300, %v378
        %v380 = vpop.f32.mrf.mxu0
        %381 = vdwg.mxu0
        %vm382 = vcmask 130048
        %v383 = vsel %vm382, %v379, -inf
        %384 = vmax.xlane.f32.xlu0 %v383
        %v385 = vpop.xlane.xlu0 %384
        %v386 = vsub.f32 %v379, %v385
        %v387 = vmul.f32 %v386, 1.442695
        %v388 = vpow.pop %v387
        %v389 = vsel %vm382, %v388, 0.0
        %390 = vadd.xlane.f32.xlu0 %v389
        %v391 = vpop.xlane.xlu0 %390
        %v392 = vrcp.pop %v391
        %v393 = vmul.f32 1.0, %v392
        %v394 = vmul.f32 %v388, %v393
        %395 = vst.msk [vmem:[%s276] sm:$0xff] %vm382, %v394
        %v397 = vsel %vm382, %v394, 0
        %399 = vmatprep.subr.mxu0 0.0
        %400 = vmatpush1.msra.mxu0 0.0
        %401 = vmatprep.subr.mxu0 0.0
        %402 = vmatpush1.msra.mxu0 0.0
        %403 = vmatprep.subr.mxu0 0.0
        %404 = vmatpush1.msra.mxu0 0.0
        %405 = vmatprep.subr.mxu0 0.0
        %406 = vmatpush1.msra.mxu0 0.0
        %407 = vmatprep.subr.mxu0 0.0
        %408 = vmatpush1.msra.mxu0 0.0
        %409 = vmatprep.subr.mxu0 0.0
        %410 = vmatpush1.msra.mxu0 0.0
        %411 = vmatprep.subr.mxu0 0.0
        %412 = vmatpush1.msra.mxu0 0.0
        %413 = vmatprep.subr.mxu0 0.0
        %414 = vmatpush1.msra.mxu0 0.0
        %415 = vmatprep.subr.mxu0 0.0
        %416 = vmatpush1.msra.mxu0 0.0
        %417 = vmatprep.subr.mxu0 0.0
        %418 = vmatpush1.msra.mxu0 0.0
        %419 = vmatprep.subr.mxu0 0.0
        %420 = vmatpush1.msra.mxu0 0.0
        %421 = vmatprep.subr.mxu0 0.0
        %422 = vmatpush1.msra.mxu0 0.0
        %423 = vmatprep.subr.mxu0 0.0
        %424 = vmatpush1.msra.mxu0 0.0
        %425 = vmatprep.subr.mxu0 0.0
        %426 = vmatpush1.msra.mxu0 0.0
        %427 = vmatprep.subr.mxu0 0.0
        %428 = vmatpush1.msra.mxu0 %v294
        %429 = vmatprep.subr.mxu0 0.0
        %430 = vmatpush1.msra.mxu0 %v293
        %431 = vmatprep.subr.mxu0 0.0
        %432 = vmatpush2.msra.mxu0 0.0
        %433 = vmatprep.subr.mxu0 0.0
        %434 = vmatpush2.msra.mxu0 0.0
        %435 = vmatprep.subr.mxu0 0.0
        %436 = vmatpush2.msra.mxu0 0.0
        %437 = vmatprep.subr.mxu0 0.0
        %438 = vmatpush2.msra.mxu0 0.0
        %439 = vmatprep.subr.mxu0 0.0
        %440 = vmatpush2.msra.mxu0 0.0
        %441 = vmatprep.subr.mxu0 0.0
        %442 = vmatpush2.msra.mxu0 0.0
        %443 = vmatprep.subr.mxu0 0.0
        %444 = vmatpush2.msra.mxu0 0.0
        %445 = vmatprep.subr.mxu0 0.0
        %446 = vmatpush2.msra.mxu0 0.0
        %447 = vmatprep.subr.mxu0 0.0
        %448 = vmatpush2.msra.mxu0 0.0
        %449 = vmatprep.subr.mxu0 0.0
        %450 = vmatpush2.msra.mxu0 0.0
        %451 = vmatprep.subr.mxu0 0.0
        %452 = vmatpush2.msra.mxu0 0.0
        %453 = vmatprep.subr.mxu0 0.0
        %454 = vmatpush2.msra.mxu0 0.0
        %455 = vmatprep.subr.mxu0 0.0
        %456 = vmatpush2.msra.mxu0 0.0
        %457 = vmatprep.subr.mxu0 0.0
        %458 = vmatpush2.msra.mxu0 0.0
        %459 = vmatprep.subr.mxu0 0.0
        %460 = vmatpush2.msra.mxu0 0.0
        %461 = vmatprep.subr.mxu0 0.0
        %462 = vmatpush2.msra.mxu0 0.0
        %463 = vmatprep.mubr.f32.mxu0 0.0
        %464 = vmatmul.mubr.f32.gmra.mxu0 %v397
        %v465 = vpop.f32.mrf.mxu0
        %v466 = vadd.f32 0.0, %v465
        %v467 = vpop.f32.mrf.mxu0
        %468 = vdwg.mxu0
        %v469 = vld [vmem:[%s3] sm:$0xff]
        %v470 = vld [vmem:[%s3 + $0x8] sm:$0xff]
        %v471 = vld [vmem:[%s3 + $0x10] sm:$0xff]
        %v472 = vld [vmem:[%s3 + $0x18] sm:$0xff]
        %v473 = vld [vmem:[%s3 + $0x20] sm:$0xff]
        %v474 = vld [vmem:[%s3 + $0x28] sm:$0xff]
        %v475 = vld [vmem:[%s3 + $0x30] sm:$0xff]
        %v476 = vld [vmem:[%s3 + $0x38] sm:$0xff]
        %477 = vmatprep.subr.mxu0 0.0
        %478 = vmatpush1.msra.mxu0 0.0
        %479 = vmatprep.subr.mxu0 0.0
        %480 = vmatpush1.msra.mxu0 0.0
        %481 = vmatprep.subr.mxu0 0.0
        %482 = vmatpush1.msra.mxu0 0.0
        %483 = vmatprep.subr.mxu0 0.0
        %484 = vmatpush1.msra.mxu0 0.0
        %485 = vmatprep.subr.mxu0 0.0
        %486 = vmatpush1.msra.mxu0 0.0
        %487 = vmatprep.subr.mxu0 0.0
        %488 = vmatpush1.msra.mxu0 0.0
        %489 = vmatprep.subr.mxu0 0.0
        %490 = vmatpush1.msra.mxu0 0.0
        %491 = vmatprep.subr.mxu0 0.0
        %492 = vmatpush1.msra.mxu0 0.0
        %493 = vmatprep.subr.mxu0 0.0
        %494 = vmatpush1.msra.mxu0 0.0
        %495 = vmatprep.subr.mxu0 0.0
        %496 = vmatpush1.msra.mxu0 0.0
        %497 = vmatprep.subr.mxu0 0.0
        %498 = vmatpush1.msra.mxu0 0.0
        %499 = vmatprep.subr.mxu0 0.0
        %500 = vmatpush1.msra.mxu0 0.0
        %501 = vmatprep.subr.mxu0 0.0
        %502 = vmatpush1.msra.mxu0 %v476
        %503 = vmatprep.subr.mxu0 0.0
        %504 = vmatpush1.msra.mxu0 %v475
        %505 = vmatprep.subr.mxu0 0.0
        %506 = vmatpush1.msra.mxu0 %v474
        %507 = vmatprep.subr.mxu0 0.0
        %508 = vmatpush1.msra.mxu0 %v473
        %509 = vmatprep.subr.mxu0 0.0
        %510 = vmatpush2.msra.mxu0 0.0
        %511 = vmatprep.subr.mxu0 0.0
        %512 = vmatpush2.msra.mxu0 0.0
        %513 = vmatprep.subr.mxu0 0.0
        %514 = vmatpush2.msra.mxu0 0.0
        %515 = vmatprep.subr.mxu0 0.0
        %516 = vmatpush2.msra.mxu0 0.0
        %517 = vmatprep.subr.mxu0 0.0
        %518 = vmatpush2.msra.mxu0 0.0
        %519 = vmatprep.subr.mxu0 0.0
        %520 = vmatpush2.msra.mxu0 0.0
        %521 = vmatprep.subr.mxu0 0.0
        %522 = vmatpush2.msra.mxu0 0.0
        %523 = vmatprep.subr.mxu0 0.0
        %524 = vmatpush2.msra.mxu0 0.0
        %525 = vmatprep.subr.mxu0 0.0
        %526 = vmatpush2.msra.mxu0 0.0
        %527 = vmatprep.subr.mxu0 0.0
        %528 = vmatpush2.msra.mxu0 0.0
        %529 = vmatprep.subr.mxu0 0.0
        %530 = vmatpush2.msra.mxu0 0.0
        %531 = vmatprep.subr.mxu0 0.0
        %532 = vmatpush2.msra.mxu0 0.0
        %533 = vmatprep.subr.mxu0 0.0
        %534 = vmatpush2.msra.mxu0 0.0
        %535 = vmatprep.subr.mxu0 0.0
        %536 = vmatpush2.msra.mxu0 0.0
        %537 = vmatprep.subr.mxu0 0.0
        %538 = vmatpush2.msra.mxu0 0.0
        %539 = vmatprep.subr.mxu0 0.0
        %540 = vmatpush2.msra.mxu0 0.0
        %541 = vmatprep.mubr.f32.mxu0 0.0
        %542 = vmatmul.mubr.f32.gmra.mxu0 %v304
        %v543 = vpop.f32.mrf.mxu0
        %v544 = vadd.f32 0.0, %v543
        %v545 = vpop.f32.mrf.mxu0
        %546 = vdwg.mxu0
        %v548 = vsel %vm302, %v466, 0
        %550 = vmatprep.subr.mxu0 0.0
        %551 = vmatpush1.msra.mxu0 0.0
        %552 = vmatprep.subr.mxu0 0.0
        %553 = vmatpush1.msra.mxu0 0.0
        %554 = vmatprep.subr.mxu0 0.0
        %555 = vmatpush1.msra.mxu0 0.0
        %556 = vmatprep.subr.mxu0 0.0
        %557 = vmatpush1.msra.mxu0 0.0
        %558 = vmatprep.subr.mxu0 0.0
        %559 = vmatpush1.msra.mxu0 0.0
        %560 = vmatprep.subr.mxu0 0.0
        %561 = vmatpush1.msra.mxu0 0.0
        %562 = vmatprep.subr.mxu0 0.0
        %563 = vmatpush1.msra.mxu0 0.0
        %564 = vmatprep.subr.mxu0 0.0
        %565 = vmatpush1.msra.mxu0 0.0
        %566 = vmatprep.subr.mxu0 0.0
        %567 = vmatpush1.msra.mxu0 0.0
        %568 = vmatprep.subr.mxu0 0.0
        %569 = vmatpush1.msra.mxu0 0.0
        %570 = vmatprep.subr.mxu0 0.0
        %571 = vmatpush1.msra.mxu0 0.0
        %572 = vmatprep.subr.mxu0 0.0
        %573 = vmatpush1.msra.mxu0 0.0
        %574 = vmatprep.subr.mxu0 0.0
        %575 = vmatpush1.msra.mxu0 %v472
        %576 = vmatprep.subr.mxu0 0.0
        %577 = vmatpush1.msra.mxu0 %v471
        %578 = vmatprep.subr.mxu0 0.0
        %579 = vmatpush1.msra.mxu0 %v470
        %580 = vmatprep.subr.mxu0 0.0
        %581 = vmatpush1.msra.mxu0 %v469
        %582 = vmatprep.subr.mxu0 0.0
        %583 = vmatpush2.msra.mxu0 0.0
        %584 = vmatprep.subr.mxu0 0.0
        %585 = vmatpush2.msra.mxu0 0.0
        %586 = vmatprep.subr.mxu0 0.0
        %587 = vmatpush2.msra.mxu0 0.0
        %588 = vmatprep.subr.mxu0 0.0
        %589 = vmatpush2.msra.mxu0 0.0
        %590 = vmatprep.subr.mxu0 0.0
        %591 = vmatpush2.msra.mxu0 0.0
        %592 = vmatprep.subr.mxu0 0.0
        %593 = vmatpush2.msra.mxu0 0.0
        %594 = vmatprep.subr.mxu0 0.0
        %595 = vmatpush2.msra.mxu0 0.0
        %596 = vmatprep.subr.mxu0 0.0
        %597 = vmatpush2.msra.mxu0 0.0
        %598 = vmatprep.subr.mxu0 0.0
        %599 = vmatpush2.msra.mxu0 0.0
        %600 = vmatprep.subr.mxu0 0.0
        %601 = vmatpush2.msra.mxu0 0.0
        %602 = vmatprep.subr.mxu0 0.0
        %603 = vmatpush2.msra.mxu0 0.0
        %604 = vmatprep.subr.mxu0 0.0
        %605 = vmatpush2.msra.mxu0 0.0
        %606 = vmatprep.subr.mxu0 0.0
        %607 = vmatpush2.msra.mxu0 0.0
        %608 = vmatprep.subr.mxu0 0.0
        %609 = vmatpush2.msra.mxu0 0.0
        %610 = vmatprep.subr.mxu0 0.0
        %611 = vmatpush2.msra.mxu0 0.0
        %612 = vmatprep.subr.mxu0 0.0
        %613 = vmatpush2.msra.mxu0 0.0
        %614 = vmatprep.mubr.f32.mxu0 0.0
        %615 = vmatmul.mubr.f32.gmra.mxu0 %v548
        %v616 = vpop.f32.mrf.mxu0
        %v617 = vadd.f32 %v544, %v616
        %v618 = vpop.f32.mrf.mxu0
        %619 = vdwg.mxu0
        %v620 = vtanh.pop %v617
        %621 = vst.msk [vmem:[%s269] sm:$0xff] %vm302, %v620
        %s622 = sand.u32 %s146, 1
        %s623 = scalar_lea.sflag [#allocation3], %s622
        %s624 = sand.u32 %s146, 1
        %s625 = smul.addr %s624, 8
        %s626 = scalar_lea.vmem [#allocation2], %s625
        %s627 = sand.u32 %s174, 1
        %s628 = scalar_lea.sflag [#allocation5], %s627
        %s629 = sand.u32 %s174, 1
        %s630 = smul.addr %s629, 8
        %s631 = scalar_lea.vmem [#allocation4], %s630
        // Predicated region
        $region37: #{tpu_custom_call.1} parent=35 // pred_check
          %p632 = pneg %p156
        $region38: #{tpu_custom_call.1} parent=35 // pred_check_branch
          %634 = sbr.rel (%p632) target = $region40
        $region39: #{tpu_custom_call.1} parent=35 // pred_region
          %s636 = ssub.s32 128, 128
          %637 = vsyncadd %s623, %s636
          %s638 = sadd.s32 %s28, %s27
          %s639 = smul.addr %s638, 128
          %s640 = scalar_lea.hbm %s4, %s639
          %s642 = sshll.u32 %s626, 4
          %s643 = int_to_ptr.vmem [resolvable:$true] %s642
          %645 = dma.vmem_to_hbm [thread:$0]  %s643, 128, %s640, %s623
        $region40: #{tpu_custom_call.1} parent=35 // pred_fallthru
          _
        // Predicated region
        $region41: #{tpu_custom_call.1} parent=35 // pred_check
          %p646 = pneg %p184
        $region42: #{tpu_custom_call.1} parent=35 // pred_check_branch
          %648 = sbr.rel (%p646) target = $region44
        $region43: #{tpu_custom_call.1} parent=35 // pred_region
          %s650 = ssub.s32 128, 128
          %651 = vsyncadd %s628, %s650
          %s652 = sadd.s32 %s28, %s27
          %s653 = smul.addr %s652, 128
          %s654 = scalar_lea.hbm %s5, %s653
          %s656 = sshll.u32 %s631, 4
          %s657 = int_to_ptr.vmem [resolvable:$true] %s656
          %659 = dma.vmem_to_hbm [thread:$0]  %s657, 128, %s654, %s628
        $region44: #{tpu_custom_call.1} parent=35 // pred_fallthru
          _
      $region36: #{tpu_custom_call.1} parent=5 // pred_fallthru
        _
      %p660 = scmp.le.s32.totalorder 2, %s18
      // Predicated region
      $region45: #{tpu_custom_call.1} parent=5 // pred_check
        %p661 = pneg %p660
      $region46: #{tpu_custom_call.1} parent=5 // pred_check_branch
        %663 = sbr.rel (%p661) target = $region48
      $region47: #{tpu_custom_call.1} parent=5 // pred_region
        %s664 = ssub.s32 %s18, 2
        // Predicated region
        $region49: #{tpu_custom_call.1} parent=47 // pred_check
          %p665 = pneg %p162
        $region50: #{tpu_custom_call.1} parent=47 // pred_check_branch
          %667 = sbr.rel (%p665) target = $region52
        $region51: #{tpu_custom_call.1} parent=47 // pred_region
          %s668 = sand.u32 %s147, 1
          %s669 = scalar_lea.sflag [#allocation3], %s668
          %s670 = sand.u32 %s147, 1
          %s671 = smul.addr %s670, 8
          %s672 = scalar_lea.vmem [#allocation2], %s671
          %673 = dma.done %s669, 128
        $region52: #{tpu_custom_call.1} parent=47 // pred_fallthru
          _
        // Predicated region
        $region53: #{tpu_custom_call.1} parent=47 // pred_check
          %p674 = pneg %p190
        $region54: #{tpu_custom_call.1} parent=47 // pred_check_branch
          %676 = sbr.rel (%p674) target = $region56
        $region55: #{tpu_custom_call.1} parent=47 // pred_region
          %s677 = sand.u32 %s175, 1
          %s678 = scalar_lea.sflag [#allocation5], %s677
          %s679 = sand.u32 %s175, 1
          %s680 = smul.addr %s679, 8
          %s681 = scalar_lea.vmem [#allocation4], %s680
          %682 = dma.done %s678, 128
        $region56: #{tpu_custom_call.1} parent=47 // pred_fallthru
          _
      $region48: #{tpu_custom_call.1} parent=5 // pred_fallthru
        _
    $region6: #{tpu_custom_call.1} parent=1 // loop_footer
      %s22 = sadd.s32 1, %s18
    $region7: #{tpu_custom_call.1} parent=1 // loop_footer_branch
      %17 = sbr.rel target = $region3
    $region8: #{tpu_custom_call.1} parent=1 // loop_exit
      _
    %683 = vsyncpa [#allocation3], 1
    %s684 = scalar_lea.sflag [#allocation3], 1
    %685 = vsyncpa %s684, 1
    %686 = vsyncpa [#allocation5], 1
    %s687 = scalar_lea.sflag [#allocation5], 1
    %688 = vsyncpa %s687, 1

// kernel: tpu_custom_call.1
$region0: #{tpu_custom_call.1}
  #allocation0 [shape = 'u32[]', space=smem, size = 0x4, offset = 0x4, fixed_abs, tag = 'smem constant byte address 0x4 - core index']
  #allocation1 [shape = 'u32[144,128]{1,0:T(1,128)}', space=vmem, size = 0x12000, scoped, tag = 'internal scratch']
  %s0 = inlined_call_operand.vmem [shape: f32[2,8,32], index: 0, kind: input, shape index: {}]
  %s1 = inlined_call_operand.vmem [shape: f32[2,16,32], index: 1, kind: input, shape index: {}]
  %s2 = inlined_call_operand.vmem [shape: f32[2,1,16], index: 2, kind: input, shape index: {}]
  %s3 = inlined_call_operand.vmem [shape: f32[64,32], index: 3, kind: input, shape index: {}]
  %s4 = inlined_call_operand.hbm [shape: f32[2,8,32], index: 4, kind: output, shape index: {0}]
  %s5 = inlined_call_operand.hbm [shape: f32[2,8,16], index: 5, kind: output, shape index: {1}]
  %6 = xla_tuple %s4, %s5
  %s7 = sld [smem:[#allocation0]]
  $region57: #{tpu_custom_call.1} parent=0
    _
  %s9 = ssub.s32 1, %s7
  %s10 = scalar_select 0, %s9, %s7
  $region1: #{tpu_custom_call.1} parent=0
    #allocation2 [shape = 'u8[8192]{0}', space=vmem, size = 0x2000, scoped, tag = 'output window, operand 0']
    #allocation3 [shape = 's32[2]{0}', space=sflag, size = 0x8, scoped, tag = 'scoped memory for tpu_custom_call.1']
    #allocation4 [shape = 'u8[8192]{0}', space=vmem, size = 0x2000, scoped, tag = 'output window, operand 1']
    #allocation5 [shape = 's32[2]{0}', space=sflag, size = 0x8, scoped, tag = 'scoped memory for tpu_custom_call.1']
    %11 = vsyncpa [#allocation3], 0
    %s12 = scalar_lea.sflag [#allocation3], 1
    %13 = vsyncpa %s12, 0
    %14 = vsyncpa [#allocation5], 0
    %s15 = scalar_lea.sflag [#allocation5], 1
    %16 = vsyncpa %s15, 0
    loop: start=0, step=1, limit=4
    $region2: #{tpu_custom_call.1} parent=1 // loop_pre_header
      _
    $region3: #{tpu_custom_call.1} parent=1 // loop_header
      %s18 = sphi 0, %s22
      %p19 = scmp.ge.s32.totalorder %s18, 4
      %s25 = sphi 0, %s37
      %s26 = sphi 0, %s33
      %s27 = sphi 0, %s25
      %s28 = sphi 0, %s26
      %s29 = sphi 0, %s27
      %s30 = sphi 0, %s28
      %s42 = sphi 0, %s44
      %s45 = sphi 0, %s42
      %s46 = sphi 0, %s45
      %s62 = sphi 0, %s46
      %s68 = sphi 0, %s70
      %s71 = sphi 0, %s68
      %s72 = sphi 0, %s71
      %s88 = sphi 0, %s72
      %s94 = sphi 0, %s96
      %s97 = sphi 0, %s94
      %s98 = sphi 0, %s97
      %s114 = sphi 0, %s98
      %s118 = sphi 0, %s118
      %s120 = sphi 0, %s118
      %s121 = sphi 0, %s120
      %s135 = sphi 0, %s121
      %s143 = sphi 0, %s145
      %s146 = sphi 0, %s143
      %s147 = sphi 0, %s146
      %s163 = sphi 0, %s147
      %s171 = sphi 0, %s173
      %s174 = sphi 0, %s171
      %s175 = sphi 0, %s174
      %s191 = sphi 0, %s175
    $region4: #{tpu_custom_call.1} parent=1 // loop_header_branch
      %21 = sbr.rel (%p19) target = $region8
    $region5: #{tpu_custom_call.1} parent=1 // loop_body
      %s23 = ssub.s32 %s18, 1
      %s24 = ssub.s32 %s18, 2
      %s31 = sadd.s32 1, %s26
      %p32 = scmp.ge.s32.totalorder %s31, 1
      %s33 = scalar_select %p32, 0, %s31
      %s34 = sadd.s32 1, %s25
      %s35 = scalar_select %p32, %s34, %s25
      %p36 = scmp.ge.s32.totalorder %s35, 2
      %s37 = scalar_select %p36, 0, %s35
      %s38 = ssub.s32 %s25, %s37
      %s39 = ssub.s32 %s26, %s33
      %s40 = sor.u32 %s38, %s39
      %p41 = scmp.eq.s32.totalorder %s40, 0
      %s43 = sadd.s32 %s42, 1
      %s44 = scalar_select %p41, %s42, %s43
      %p47 = pneg %p41
      %p48 = scmp.eq.s32.totalorder %s18, 1
      %p49 = por %p47, %p48
      %p50 = scmp.ne.s32.totalorder %s42, %s45
      %p51 = scmp.eq.s32.totalorder %s18, 0
      %p52 = por %p50, %p51
      %p53 = scmp.ne.s32.totalorder %s42, %s45
      %p54 = scmp.eq.s32.totalorder %s23, 1
      %p55 = por %p53, %p54
      %p56 = scmp.ne.s32.totalorder %s45, %s46
      %p57 = scmp.eq.s32.totalorder %s23, 0
      %p58 = por %p56, %p57
      %p59 = scmp.ne.s32.totalorder %s45, %s46
      %p60 = scmp.eq.s32.totalorder %s24, 1
      %p61 = por %p59, %p60
      %p63 = scmp.ne.s32.totalorder %s46, %s62
      %p64 = scmp.eq.s32.totalorder %s24, 0
      %p65 = por %p63, %p64
      %s66 = ssub.s32 %s25, %s37
      %p67 = scmp.eq.s32.totalorder %s66, 0
      %s69 = sadd.s32 %s68, 1
      %s70 = scalar_select %p67, %s68, %s69
      %p73 = pneg %p67
      %p74 = scmp.eq.s32.totalorder %s18, 1
      %p75 = por %p73, %p74
      %p76 = scmp.ne.s32.totalorder %s68, %s71
      %p77 = scmp.eq.s32.totalorder %s18, 0
      %p78 = por %p76, %p77
      %p79 = scmp.ne.s32.totalorder %s68, %s71
      %p80 = scmp.eq.s32.totalorder %s23, 1
      %p81 = por %p79, %p80
      %p82 = scmp.ne.s32.totalorder %s71, %s72
      %p83 = scmp.eq.s32.totalorder %s23, 0
      %p84 = por %p82, %p83
      %p85 = scmp.ne.s32.totalorder %s71, %s72
      %p86 = scmp.eq.s32.totalorder %s24, 1
      %p87 = por %p85, %p86
      %p89 = scmp.ne.s32.totalorder %s72, %s88
      %p90 = scmp.eq.s32.totalorder %s24, 0
      %p91 = por %p89, %p90
      %s92 = ssub.s32 %s25, %s37
      %p93 = scmp.eq.s32.totalorder %s92, 0
      %s95 = sadd.s32 %s94, 1
      %s96 = scalar_select %p93, %s94, %s95
      %p99 = pneg %p93
      %p100 = scmp.eq.s32.totalorder %s18, 1
      %p101 = por %p99, %p100
      %p102 = scmp.ne.s32.totalorder %s94, %s97
      %p103 = scmp.eq.s32.totalorder %s18, 0
      %p104 = por %p102, %p103
      %p105 = scmp.ne.s32.totalorder %s94, %s97
      %p106 = scmp.eq.s32.totalorder %s23, 1
      %p107 = por %p105, %p106
      %p108 = scmp.ne.s32.totalorder %s97, %s98
      %p109 = scmp.eq.s32.totalorder %s23, 0
      %p110 = por %p108, %p109
      %p111 = scmp.ne.s32.totalorder %s97, %s98
      %p112 = scmp.eq.s32.totalorder %s24, 1
      %p113 = por %p111, %p112
      %p115 = scmp.ne.s32.totalorder %s98, %s114
      %p116 = scmp.eq.s32.totalorder %s24, 0
      %p117 = por %p115, %p116
      %s119 = sadd.s32 %s118, 1
      %p122 = scmp.eq.s32.totalorder %s18, 1
      %p123 = scmp.ne.s32.totalorder %s118, %s120
      %p124 = scmp.eq.s32.totalorder %s18, 0
      %p125 = por %p123, %p124
      %p126 = scmp.ne.s32.totalorder %s118, %s120
      %p127 = scmp.eq.s32.totalorder %s23, 1
      %p128 = por %p126, %p127
      %p129 = scmp.ne.s32.totalorder %s120, %s121
      %p130 = scmp.eq.s32.totalorder %s23, 0
      %p131 = por %p129, %p130
      %p132 = scmp.ne.s32.totalorder %s120, %s121
      %p133 = scmp.eq.s32.totalorder %s24, 1
      %p134 = por %p132, %p133
      %p136 = scmp.ne.s32.totalorder %s121, %s135
      %p137 = scmp.eq.s32.totalorder %s24, 0
      %p138 = por %p136, %p137
      %s139 = ssub.s32 %s25, %s37
      %s140 = ssub.s32 %s26, %s33
      %s141 = sor.u32 %s139, %s140
      %p142 = scmp.eq.s32.totalorder %s141, 0
      %s144 = sadd.s32 %s143, 1
      %s145 = scalar_select %p142, %s143, %s144
      %p148 = pneg %p142
      %p149 = scmp.eq.s32.totalorder %s18, 1
      %p150 = por %p148, %p149
      %p151 = scmp.ne.s32.totalorder %s143, %s146
      %p152 = scmp.eq.s32.totalorder %s18, 0
      %p153 = por %p151, %p152
      %p154 = scmp.ne.s32.totalorder %s143, %s146
      %p155 = scmp.eq.s32.totalorder %s23, 1
      %p156 = por %p154, %p155
      %p157 = scmp.ne.s32.totalorder %s146, %s147
      %p158 = scmp.eq.s32.totalorder %s23, 0
      %p159 = por %p157, %p158
      %p160 = scmp.ne.s32.totalorder %s146, %s147
      %p161 = scmp.eq.s32.totalorder %s24, 1
      %p162 = por %p160, %p161
      %p164 = scmp.ne.s32.totalorder %s147, %s163
      %p165 = scmp.eq.s32.totalorder %s24, 0
      %p166 = por %p164, %p165
      %s167 = ssub.s32 %s25, %s37
      %s168 = ssub.s32 %s26, %s33
      %s169 = sor.u32 %s167, %s168
      %p170 = scmp.eq.s32.totalorder %s169, 0
      %s172 = sadd.s32 %s171, 1
      %s173 = scalar_select %p170, %s171, %s172
      %p176 = pneg %p170
      %p177 = scmp.eq.s32.totalorder %s18, 1
      %p178 = por %p176, %p177
      %p179 = scmp.ne.s32.totalorder %s171, %s174
      %p180 = scmp.eq.s32.totalorder %s18, 0
      %p181 = por %p179, %p180
      %p182 = scmp.ne.s32.totalorder %s171, %s174
      %p183 = scmp.eq.s32.totalorder %s23, 1
      %p184 = por %p182, %p183
      %p185 = scmp.ne.s32.totalorder %s174, %s175
      %p186 = scmp.eq.s32.totalorder %s23, 0
      %p187 = por %p185, %p186
      %p188 = scmp.ne.s32.totalorder %s174, %s175
      %p189 = scmp.eq.s32.totalorder %s24, 1
      %p190 = por %p188, %p189
      %p192 = scmp.ne.s32.totalorder %s175, %s191
      %p193 = scmp.eq.s32.totalorder %s24, 0
      %p194 = por %p192, %p193
      %p195 = scmp.le.s32.totalorder 1, %s18
      %p196 = scmp.lt.s32.totalorder %s18, 3
      %p197 = pnand %p195, %p196
      %p198 = pneg %p197
      // Predicated region
      $region9: #{tpu_custom_call.1} parent=5 // pred_check
        _
      $region10: #{tpu_custom_call.1} parent=5 // pred_check_branch
        %200 = sbr.rel (%p197) target = $region12
      $region11: #{tpu_custom_call.1} parent=5 // pred_region
        %s201 = ssub.s32 %s18, 1
        // Predicated region
        $region13: #{tpu_custom_call.1} parent=11 // pred_check
          %p202 = pneg %p131
        $region14: #{tpu_custom_call.1} parent=11 // pred_check_branch
          %204 = sbr.rel (%p202) target = $region16
        $region15: #{tpu_custom_call.1} parent=11 // pred_region
          _
        $region16: #{tpu_custom_call.1} parent=11 // pred_fallthru
          _
      $region12: #{tpu_custom_call.1} parent=5 // pred_fallthru
        _
      %p205 = scmp.lt.s32.totalorder %s18, 2
      // Predicated region
      $region17: #{tpu_custom_call.1} parent=5 // pred_check
        %p206 = pneg %p205
      $region18: #{tpu_custom_call.1} parent=5 // pred_check_branch
        %208 = sbr.rel (%p206) target = $region20
      $region19: #{tpu_custom_call.1} parent=5 // pred_region
        // Predicated region
        $region21: #{tpu_custom_call.1} parent=19 // pred_check
          %p209 = pneg %p52
        $region22: #{tpu_custom_call.1} parent=19 // pred_check_branch
          %211 = sbr.rel (%p209) target = $region24
        $region23: #{tpu_custom_call.1} parent=19 // pred_region
          %p212 = scmp.lt.s32.totalorder %s25, 1
          %s213 = scalar_select %p212, %s25, 1
          %p214 = scmp.lt.s32.totalorder %s26, 0
          %s215 = scalar_select %p214, %s26, 0
          %s216 = sadd.s32 %s215, %s213
          %s217 = smul.addr %s216, 8
          %s218 = scalar_lea.vmem %s0, %s217
        $region24: #{tpu_custom_call.1} parent=19 // pred_fallthru
          _
        // Predicated region
        $region25: #{tpu_custom_call.1} parent=19 // pred_check
          %p219 = pneg %p78
        $region26: #{tpu_custom_call.1} parent=19 // pred_check_branch
          %221 = sbr.rel (%p219) target = $region28
        $region27: #{tpu_custom_call.1} parent=19 // pred_region
          %p222 = scmp.lt.s32.totalorder %s25, 1
          %s223 = scalar_select %p222, %s25, 1
          %s224 = smul.addr %s223, 2
          %s225 = smul.addr %s224, 8
          %s226 = scalar_lea.vmem %s1, %s225
        $region28: #{tpu_custom_call.1} parent=19 // pred_fallthru
          _
        // Predicated region
        $region29: #{tpu_custom_call.1} parent=19 // pred_check
          %p227 = pneg %p104
        $region30: #{tpu_custom_call.1} parent=19 // pred_check_branch
          %229 = sbr.rel (%p227) target = $region32
        $region31: #{tpu_custom_call.1} parent=19 // pred_region
          %p230 = scmp.lt.s32.totalorder %s25, 1
          %s231 = scalar_select %p230, %s25, 1
          %s232 = scalar_lea.vmem %s2, %s231
        $region32: #{tpu_custom_call.1} parent=19 // pred_fallthru
          _
      $region20: #{tpu_custom_call.1} parent=5 // pred_fallthru
        _
      %p233 = scmp.le.s32.totalorder 1, %s18
      %p234 = scmp.lt.s32.totalorder %s18, 3
      %p235 = pnand %p233, %p234
      %p236 = pneg %p235
      // Predicated region
      $region33: #{tpu_custom_call.1} parent=5 // pred_check
        _
      $region34: #{tpu_custom_call.1} parent=5 // pred_check_branch
        %238 = sbr.rel (%p235) target = $region36
      $region35: #{tpu_custom_call.1} parent=5 // pred_region
        %s239 = ssub.s32 %s18, 1
        %p240 = scmp.lt.s32.totalorder %s27, 1
        %s241 = scalar_select %p240, %s27, 1
        %p242 = scmp.lt.s32.totalorder %s28, 0
        %s243 = scalar_select %p242, %s28, 0
        %s244 = sadd.s32 %s243, %s241
        %s245 = smul.addr %s244, 8
        %s246 = scalar_lea.vmem %s0, %s245
        %p247 = pneg %p58
        %p248 = pneg %p55
        %p249 = scmp.lt.s32.totalorder %s27, 1
        %s250 = scalar_select %p249, %s27, 1
        %s251 = smul.addr %s250, 2
        %s252 = smul.addr %s251, 8
        %s253 = scalar_lea.vmem %s1, %s252
        %p254 = pneg %p84
        %p255 = pneg %p81
        %p256 = scmp.lt.s32.totalorder %s27, 1
        %s257 = scalar_select %p256, %s27, 1
        %s258 = scalar_lea.vmem %s2, %s257
        %p259 = pneg %p110
        %p260 = pneg %p107
        %p261 = pneg %p131
        %p262 = pneg %p128
        %p263 = pneg %p159
        %p264 = pneg %p156
        %s265 = sand.u32 %s146, 1
        %s266 = scalar_lea.sflag [#allocation3], %s265
        %s267 = sand.u32 %s146, 1
        %s268 = smul.addr %s267, 8
        %s269 = scalar_lea.vmem [#allocation2], %s268
        %p270 = pneg %p187
        %p271 = pneg %p184
        %s272 = sand.u32 %s174, 1
        %s273 = scalar_lea.sflag [#allocation5], %s272
        %s274 = sand.u32 %s174, 1
        %s275 = smul.addr %s274, 8
        %s276 = scalar_lea.vmem [#allocation4], %s275
        %p277 = scmp.lt.s32.totalorder %s27, 1
        %s278 = scalar_select %p277, %s27, 1
        %p279 = scmp.lt.s32.totalorder %s28, 0
        %s280 = scalar_select %p279, %s28, 0
        %s281 = sadd.s32 %s280, %s278
        %s282 = smul.addr %s281, 8
        %s283 = scalar_lea.vmem %s0, %s282
        %p284 = scmp.lt.s32.totalorder %s27, 1
        %s285 = scalar_select %p284, %s27, 1
        %s286 = smul.addr %s285, 2
        %s287 = smul.addr %s286, 8
        %s288 = scalar_lea.vmem %s1, %s287
        %p289 = scmp.lt.s32.totalorder %s27, 1
        %s290 = scalar_select %p289, %s27, 1
        %s291 = scalar_lea.vmem %s2, %s290
        %v292 = vld [vmem:[%s283] sm:$0xff]
        %v293 = vld [vmem:[%s288] sm:$0xff]
        %v294 = vld [vmem:[%s288 + $0x8] sm:$0xff]
        %v295 = vld [vmem:[%s291] sm:$0x1]
        %v297 = vlaneseq
        %v298 = vshrl.u32 %v297, 7
        %v299 = vsub.s32 0, %v298
        %v300 = vrot.slane %v295, %v299
        %vm302 = vcmask 261120
        %v304 = vsel %vm302, %v292, 0
        %v307 = vsel %vm302, %v293, 0
        %v310 = vsel %vm302, %v294, 0
        %312 = vmatprep.subr.mxu0 0.0
        %313 = vmatpush1.xpose.msra.mxu0 0.0
        %314 = vmatprep.subr.mxu0 0.0
        %315 = vmatpush1.xpose.msra.mxu0 0.0
        %316 = vmatprep.subr.mxu0 0.0
        %317 = vmatpush1.xpose.msra.mxu0 0.0
        %318 = vmatprep.subr.mxu0 0.0
        %319 = vmatpush1.xpose.msra.mxu0 0.0
        %320 = vmatprep.subr.mxu0 0.0
        %321 = vmatpush1.xpose.msra.mxu0 0.0
        %322 = vmatprep.subr.mxu0 0.0
        %323 = vmatpush1.xpose.msra.mxu0 0.0
        %324 = vmatprep.subr.mxu0 0.0
        %325 = vmatpush1.xpose.msra.mxu0 0.0
        %326 = vmatprep.subr.mxu0 0.0
        %327 = vmatpush1.xpose.msra.mxu0 0.0
        %328 = vmatprep.subr.mxu0 0.0
        %329 = vmatpush1.xpose.msra.mxu0 0.0
        %330 = vmatprep.subr.mxu0 0.0
        %331 = vmatpush1.xpose.msra.mxu0 0.0
        %332 = vmatprep.subr.mxu0 0.0
        %333 = vmatpush1.xpose.msra.mxu0 0.0
        %334 = vmatprep.subr.mxu0 0.0
        %335 = vmatpush1.xpose.msra.mxu0 0.0
        %336 = vmatprep.subr.mxu0 0.0
        %337 = vmatpush1.xpose.msra.mxu0 0.0
        %338 = vmatprep.subr.mxu0 0.0
        %339 = vmatpush1.xpose.msra.mxu0 0.0
        %340 = vmatprep.subr.mxu0 0.0
        %341 = vmatpush1.xpose.msra.mxu0 %v310
        %342 = vmatprep.subr.mxu0 0.0
        %343 = vmatpush1.xpose.msra.mxu0 %v307
        %344 = vmatprep.subr.mxu0 0.0
        %345 = vmatpush2.xpose.msra.mxu0 0.0
        %346 = vmatprep.subr.mxu0 0.0
        %347 = vmatpush2.xpose.msra.mxu0 0.0
        %348 = vmatprep.subr.mxu0 0.0
        %349 = vmatpush2.xpose.msra.mxu0 0.0
        %350 = vmatprep.subr.mxu0 0.0
        %351 = vmatpush2.xpose.msra.mxu0 0.0
        %352 = vmatprep.subr.mxu0 0.0
        %353 = vmatpush2.xpose.msra.mxu0 0.0
        %354 = vmatprep.subr.mxu0 0.0
        %355 = vmatpush2.xpose.msra.mxu0 0.0
        %356 = vmatprep.subr.mxu0 0.0
        %357 = vmatpush2.xpose.msra.mxu0 0.0
        %358 = vmatprep.subr.mxu0 0.0
        %359 = vmatpush2.xpose.msra.mxu0 0.0
        %360 = vmatprep.subr.mxu0 0.0
        %361 = vmatpush2.xpose.msra.mxu0 0.0
        %362 = vmatprep.subr.mxu0 0.0
        %363 = vmatpush2.xpose.msra.mxu0 0.0
        %364 = vmatprep.subr.mxu0 0.0
        %365 = vmatpush2.xpose.msra.mxu0 0.0
        %366 = vmatprep.subr.mxu0 0.0
        %367 = vmatpush2.xpose.msra.mxu0 0.0
        %368 = vmatprep.subr.mxu0 0.0
        %369 = vmatpush2.xpose.msra.mxu0 0.0
        %370 = vmatprep.subr.mxu0 0.0
        %371 = vmatpush2.xpose.msra.mxu0 0.0
        %372 = vmatprep.subr.mxu0 0.0
        %373 = vmatpush2.xpose.msra.mxu0 0.0
        %374 = vmatprep.subr.mxu0 0.0
        %375 = vmatpush2.xpose.msra.mxu0 0.0
        %376 = vmatprep.mubr.f32.mxu0 0.0
        %377 = vmatmul.mubr.f32.gmra.mxu0 %v304
        %v378 = vpop.f32.mrf.mxu0
        %v379 = vadd.f32 %v300, %v378
        %v380 = vpop.f32.mrf.mxu0
        %381 = vdwg.mxu0
        %vm382 = vcmask 130048
        %v383 = vsel %vm382, %v379, -inf
        %384 = vmax.xlane.f32.xlu0 %v383
        %v385 = vpop.xlane.xlu0 %384
        %v386 = vsub.f32 %v379, %v385
        %v387 = vmul.f32 %v386, 1.442695
        %v388 = vpow.pop %v387
        %v389 = vsel %vm382, %v388, 0.0
        %390 = vadd.xlane.f32.xlu0 %v389
        %v391 = vpop.xlane.xlu0 %390
        %v392 = vrcp.pop %v391
        %v393 = vmul.f32 1.0, %v392
        %v394 = vmul.f32 %v388, %v393
        %395 = vst.msk [vmem:[%s276] sm:$0xff] %vm382, %v394
        %v397 = vsel %vm382, %v394, 0
        %399 = vmatprep.subr.mxu0 0.0
        %400 = vmatpush1.msra.mxu0 0.0
        %401 = vmatprep.subr.mxu0 0.0
        %402 = vmatpush1.msra.mxu0 0.0
        %403 = vmatprep.subr.mxu0 0.0
        %404 = vmatpush1.msra.mxu0 0.0
        %405 = vmatprep.subr.mxu0 0.0
        %406 = vmatpush1.msra.mxu0 0.0
        %407 = vmatprep.subr.mxu0 0.0
        %408 = vmatpush1.msra.mxu0 0.0
        %409 = vmatprep.subr.mxu0 0.0
        %410 = vmatpush1.msra.mxu0 0.0
        %411 = vmatprep.subr.mxu0 0.0
        %412 = vmatpush1.msra.mxu0 0.0
        %413 = vmatprep.subr.mxu0 0.0
        %414 = vmatpush1.msra.mxu0 0.0
        %415 = vmatprep.subr.mxu0 0.0
        %416 = vmatpush1.msra.mxu0 0.0
        %417 = vmatprep.subr.mxu0 0.0
        %418 = vmatpush1.msra.mxu0 0.0
        %419 = vmatprep.subr.mxu0 0.0
        %420 = vmatpush1.msra.mxu0 0.0
        %421 = vmatprep.subr.mxu0 0.0
        %422 = vmatpush1.msra.mxu0 0.0
        %423 = vmatprep.subr.mxu0 0.0
        %424 = vmatpush1.msra.mxu0 0.0
        %425 = vmatprep.subr.mxu0 0.0
        %426 = vmatpush1.msra.mxu0 0.0
        %427 = vmatprep.subr.mxu0 0.0
        %428 = vmatpush1.msra.mxu0 %v294
        %429 = vmatprep.subr.mxu0 0.0
        %430 = vmatpush1.msra.mxu0 %v293
        %431 = vmatprep.subr.mxu0 0.0
        %432 = vmatpush2.msra.mxu0 0.0
        %433 = vmatprep.subr.mxu0 0.0
        %434 = vmatpush2.msra.mxu0 0.0
        %435 = vmatprep.subr.mxu0 0.0
        %436 = vmatpush2.msra.mxu0 0.0
        %437 = vmatprep.subr.mxu0 0.0
        %438 = vmatpush2.msra.mxu0 0.0
        %439 = vmatprep.subr.mxu0 0.0
        %440 = vmatpush2.msra.mxu0 0.0
        %441 = vmatprep.subr.mxu0 0.0
        %442 = vmatpush2.msra.mxu0 0.0
        %443 = vmatprep.subr.mxu0 0.0
        %444 = vmatpush2.msra.mxu0 0.0
        %445 = vmatprep.subr.mxu0 0.0
        %446 = vmatpush2.msra.mxu0 0.0
        %447 = vmatprep.subr.mxu0 0.0
        %448 = vmatpush2.msra.mxu0 0.0
        %449 = vmatprep.subr.mxu0 0.0
        %450 = vmatpush2.msra.mxu0 0.0
        %451 = vmatprep.subr.mxu0 0.0
        %452 = vmatpush2.msra.mxu0 0.0
        %453 = vmatprep.subr.mxu0 0.0
        %454 = vmatpush2.msra.mxu0 0.0
        %455 = vmatprep.subr.mxu0 0.0
        %456 = vmatpush2.msra.mxu0 0.0
        %457 = vmatprep.subr.mxu0 0.0
        %458 = vmatpush2.msra.mxu0 0.0
        %459 = vmatprep.subr.mxu0 0.0
        %460 = vmatpush2.msra.mxu0 0.0
        %461 = vmatprep.subr.mxu0 0.0
        %462 = vmatpush2.msra.mxu0 0.0
        %463 = vmatprep.mubr.f32.mxu0 0.0
        %464 = vmatmul.mubr.f32.gmra.mxu0 %v397
        %v465 = vpop.f32.mrf.mxu0
        %v466 = vadd.f32 0.0, %v465
        %v467 = vpop.f32.mrf.mxu0
        %468 = vdwg.mxu0
        %v469 = vld [vmem:[%s3] sm:$0xff]
        %v470 = vld [vmem:[%s3 + $0x8] sm:$0xff]
        %v471 = vld [vmem:[%s3 + $0x10] sm:$0xff]
        %v472 = vld [vmem:[%s3 + $0x18] sm:$0xff]
        %v473 = vld [vmem:[%s3 + $0x20] sm:$0xff]
        %v474 = vld [vmem:[%s3 + $0x28] sm:$0xff]
        %v475 = vld [vmem:[%s3 + $0x30] sm:$0xff]
        %v476 = vld [vmem:[%s3 + $0x38] sm:$0xff]
        %477 = vmatprep.subr.mxu0 0.0
        %478 = vmatpush1.msra.mxu0 0.0
        %479 = vmatprep.subr.mxu0 0.0
        %480 = vmatpush1.msra.mxu0 0.0
        %481 = vmatprep.subr.mxu0 0.0
        %482 = vmatpush1.msra.mxu0 0.0
        %483 = vmatprep.subr.mxu0 0.0
        %484 = vmatpush1.msra.mxu0 0.0
        %485 = vmatprep.subr.mxu0 0.0
        %486 = vmatpush1.msra.mxu0 0.0
        %487 = vmatprep.subr.mxu0 0.0
        %488 = vmatpush1.msra.mxu0 0.0
        %489 = vmatprep.subr.mxu0 0.0
        %490 = vmatpush1.msra.mxu0 0.0
        %491 = vmatprep.subr.mxu0 0.0
        %492 = vmatpush1.msra.mxu0 0.0
        %493 = vmatprep.subr.mxu0 0.0
        %494 = vmatpush1.msra.mxu0 0.0
        %495 = vmatprep.subr.mxu0 0.0
        %496 = vmatpush1.msra.mxu0 0.0
        %497 = vmatprep.subr.mxu0 0.0
        %498 = vmatpush1.msra.mxu0 0.0
        %499 = vmatprep.subr.mxu0 0.0
        %500 = vmatpush1.msra.mxu0 0.0
        %501 = vmatprep.subr.mxu0 0.0
        %502 = vmatpush1.msra.mxu0 %v476
        %503 = vmatprep.subr.mxu0 0.0
        %504 = vmatpush1.msra.mxu0 %v475
        %505 = vmatprep.subr.mxu0 0.0
        %506 = vmatpush1.msra.mxu0 %v474
        %507 = vmatprep.subr.mxu0 0.0
        %508 = vmatpush1.msra.mxu0 %v473
        %509 = vmatprep.subr.mxu0 0.0
        %510 = vmatpush2.msra.mxu0 0.0
        %511 = vmatprep.subr.mxu0 0.0
        %512 = vmatpush2.msra.mxu0 0.0
        %513 = vmatprep.subr.mxu0 0.0
        %514 = vmatpush2.msra.mxu0 0.0
        %515 = vmatprep.subr.mxu0 0.0
        %516 = vmatpush2.msra.mxu0 0.0
        %517 = vmatprep.subr.mxu0 0.0
        %518 = vmatpush2.msra.mxu0 0.0
        %519 = vmatprep.subr.mxu0 0.0
        %520 = vmatpush2.msra.mxu0 0.0
        %521 = vmatprep.subr.mxu0 0.0
        %522 = vmatpush2.msra.mxu0 0.0
        %523 = vmatprep.subr.mxu0 0.0
        %524 = vmatpush2.msra.mxu0 0.0
        %525 = vmatprep.subr.mxu0 0.0
        %526 = vmatpush2.msra.mxu0 0.0
        %527 = vmatprep.subr.mxu0 0.0
        %528 = vmatpush2.msra.mxu0 0.0
        %529 = vmatprep.subr.mxu0 0.0
        %530 = vmatpush2.msra.mxu0 0.0
        %531 = vmatprep.subr.mxu0 0.0
        %532 = vmatpush2.msra.mxu0 0.0
        %533 = vmatprep.subr.mxu0 0.0
        %534 = vmatpush2.msra.mxu0 0.0
        %535 = vmatprep.subr.mxu0 0.0
        %536 = vmatpush2.msra.mxu0 0.0
        %537 = vmatprep.subr.mxu0 0.0
        %538 = vmatpush2.msra.mxu0 0.0
        %539 = vmatprep.subr.mxu0 0.0
        %540 = vmatpush2.msra.mxu0 0.0
        %541 = vmatprep.mubr.f32.mxu0 0.0
        %542 = vmatmul.mubr.f32.gmra.mxu0 %v304
        %v543 = vpop.f32.mrf.mxu0
        %v544 = vadd.f32 0.0, %v543
        %v545 = vpop.f32.mrf.mxu0
        %546 = vdwg.mxu0
        %v548 = vsel %vm302, %v466, 0
        %550 = vmatprep.subr.mxu0 0.0
        %551 = vmatpush1.msra.mxu0 0.0
        %552 = vmatprep.subr.mxu0 0.0
        %553 = vmatpush1.msra.mxu0 0.0
        %554 = vmatprep.subr.mxu0 0.0
        %555 = vmatpush1.msra.mxu0 0.0
        %556 = vmatprep.subr.mxu0 0.0
        %557 = vmatpush1.msra.mxu0 0.0
        %558 = vmatprep.subr.mxu0 0.0
        %559 = vmatpush1.msra.mxu0 0.0
        %560 = vmatprep.subr.mxu0 0.0
        %561 = vmatpush1.msra.mxu0 0.0
        %562 = vmatprep.subr.mxu0 0.0
        %563 = vmatpush1.msra.mxu0 0.0
        %564 = vmatprep.subr.mxu0 0.0
        %565 = vmatpush1.msra.mxu0 0.0
        %566 = vmatprep.subr.mxu0 0.0
        %567 = vmatpush1.msra.mxu0 0.0
        %568 = vmatprep.subr.mxu0 0.0
        %569 = vmatpush1.msra.mxu0 0.0
        %570 = vmatprep.subr.mxu0 0.0
        %571 = vmatpush1.msra.mxu0 0.0
        %572 = vmatprep.subr.mxu0 0.0
        %573 = vmatpush1.msra.mxu0 0.0
        %574 = vmatprep.subr.mxu0 0.0
        %575 = vmatpush1.msra.mxu0 %v472
        %576 = vmatprep.subr.mxu0 0.0
        %577 = vmatpush1.msra.mxu0 %v471
        %578 = vmatprep.subr.mxu0 0.0
        %579 = vmatpush1.msra.mxu0 %v470
        %580 = vmatprep.subr.mxu0 0.0
        %581 = vmatpush1.msra.mxu0 %v469
        %582 = vmatprep.subr.mxu0 0.0
        %583 = vmatpush2.msra.mxu0 0.0
        %584 = vmatprep.subr.mxu0 0.0
        %585 = vmatpush2.msra.mxu0 0.0
        %586 = vmatprep.subr.mxu0 0.0
        %587 = vmatpush2.msra.mxu0 0.0
        %588 = vmatprep.subr.mxu0 0.0
        %589 = vmatpush2.msra.mxu0 0.0
        %590 = vmatprep.subr.mxu0 0.0
        %591 = vmatpush2.msra.mxu0 0.0
        %592 = vmatprep.subr.mxu0 0.0
        %593 = vmatpush2.msra.mxu0 0.0
        %594 = vmatprep.subr.mxu0 0.0
        %595 = vmatpush2.msra.mxu0 0.0
        %596 = vmatprep.subr.mxu0 0.0
        %597 = vmatpush2.msra.mxu0 0.0
        %598 = vmatprep.subr.mxu0 0.0
        %599 = vmatpush2.msra.mxu0 0.0
        %600 = vmatprep.subr.mxu0 0.0
        %601 = vmatpush2.msra.mxu0 0.0
        %602 = vmatprep.subr.mxu0 0.0
        %603 = vmatpush2.msra.mxu0 0.0
        %604 = vmatprep.subr.mxu0 0.0
        %605 = vmatpush2.msra.mxu0 0.0
        %606 = vmatprep.subr.mxu0 0.0
        %607 = vmatpush2.msra.mxu0 0.0
        %608 = vmatprep.subr.mxu0 0.0
        %609 = vmatpush2.msra.mxu0 0.0
        %610 = vmatprep.subr.mxu0 0.0
        %611 = vmatpush2.msra.mxu0 0.0
        %612 = vmatprep.subr.mxu0 0.0
        %613 = vmatpush2.msra.mxu0 0.0
        %614 = vmatprep.mubr.f32.mxu0 0.0
        %615 = vmatmul.mubr.f32.gmra.mxu0 %v548
        %v616 = vpop.f32.mrf.mxu0
        %v617 = vadd.f32 %v544, %v616
        %v618 = vpop.f32.mrf.mxu0
        %619 = vdwg.mxu0
        %v620 = vtanh.pop %v617
        %621 = vst.msk [vmem:[%s269] sm:$0xff] %vm302, %v620
        %s622 = sand.u32 %s146, 1
        %s623 = scalar_lea.sflag [#allocation3], %s622
        %s624 = sand.u32 %s146, 1
        %s625 = smul.addr %s624, 8
        %s626 = scalar_lea.vmem [#allocation2], %s625
        %s627 = sand.u32 %s174, 1
        %s628 = scalar_lea.sflag [#allocation5], %s627
        %s629 = sand.u32 %s174, 1
        %s630 = smul.addr %s629, 8
        %s631 = scalar_lea.vmem [#allocation4], %s630
        // Predicated region
        $region37: #{tpu_custom_call.1} parent=35 // pred_check
          %p632 = pneg %p156
        $region38: #{tpu_custom_call.1} parent=35 // pred_check_branch
          %634 = sbr.rel (%p632) target = $region40
        $region39: #{tpu_custom_call.1} parent=35 // pred_region
          %s636 = ssub.s32 128, 128
          %637 = vsyncadd %s623, %s636
          %s638 = sadd.s32 %s28, %s27
          %s639 = smul.addr %s638, 128
          %s640 = scalar_lea.hbm %s4, %s639
          %s642 = sshll.u32 %s626, 4
          %s643 = int_to_ptr.vmem [resolvable:$true] %s642
          %645 = dma.vmem_to_hbm [thread:$0]  %s643, 128, %s640, %s623
        $region40: #{tpu_custom_call.1} parent=35 // pred_fallthru
          _
        // Predicated region
        $region41: #{tpu_custom_call.1} parent=35 // pred_check
          %p646 = pneg %p184
        $region42: #{tpu_custom_call.1} parent=35 // pred_check_branch
          %648 = sbr.rel (%p646) target = $region44
        $region43: #{tpu_custom_call.1} parent=35 // pred_region
          %s650 = ssub.s32 128, 128
          %651 = vsyncadd %s628, %s650
          %s652 = sadd.s32 %s28, %s27
          %s653 = smul.addr %s652, 128
          %s654 = scalar_lea.hbm %s5, %s653
          %s656 = sshll.u32 %s631, 4
          %s657 = int_to_ptr.vmem [resolvable:$true] %s656
          %659 = dma.vmem_to_hbm [thread:$0]  %s657, 128, %s654, %s628
        $region44: #{tpu_custom_call.1} parent=35 // pred_fallthru
          _
      $region36: #{tpu_custom_call.1} parent=5 // pred_fallthru
        _
      %p660 = scmp.le.s32.totalorder 2, %s18
      // Predicated region
      $region45: #{tpu_custom_call.1} parent=5 // pred_check
        %p661 = pneg %p660
      $region46: #{tpu_custom_call.1} parent=5 // pred_check_branch
        %663 = sbr.rel (%p661) target = $region48
      $region47: #{tpu_custom_call.1} parent=5 // pred_region
        %s664 = ssub.s32 %s18, 2
        // Predicated region
        $region49: #{tpu_custom_call.1} parent=47 // pred_check
          %p665 = pneg %p162
        $region50: #{tpu_custom_call.1} parent=47 // pred_check_branch
          %667 = sbr.rel (%p665) target = $region52
        $region51: #{tpu_custom_call.1} parent=47 // pred_region
          %s668 = sand.u32 %s147, 1
          %s669 = scalar_lea.sflag [#allocation3], %s668
          %s670 = sand.u32 %s147, 1
          %s671 = smul.addr %s670, 8
          %s672 = scalar_lea.vmem [#allocation2], %s671
          %673 = dma.done %s669, 128
        $region52: #{tpu_custom_call.1} parent=47 // pred_fallthru
          _
        // Predicated region
        $region53: #{tpu_custom_call.1} parent=47 // pred_check
          %p674 = pneg %p190
        $region54: #{tpu_custom_call.1} parent=47 // pred_check_branch
          %676 = sbr.rel (%p674) target = $region56
        $region55: #{tpu_custom_call.1} parent=47 // pred_region
          %s677 = sand.u32 %s175, 1
          %s678 = scalar_lea.sflag [#allocation5], %s677
          %s679 = sand.u32 %s175, 1
          %s680 = smul.addr %s679, 8
          %s681 = scalar_lea.vmem [#allocation4], %s680
          %682 = dma.done %s678, 128
        $region56: #{tpu_custom_call.1} parent=47 // pred_fallthru
          _
      $region48: #{tpu_custom_call.1} parent=5 // pred_fallthru
        _
    $region6: #{tpu_custom_call.1} parent=1 // loop_footer
      %s22 = sadd.s32 1, %s18
    $region7: #{tpu_custom_call.1} parent=1 // loop_footer_branch
      %17 = sbr.rel target = $region3
    $region8: #{tpu_custom_call.1} parent=1 // loop_exit
      _
    %683 = vsyncpa [#allocation3], 1
    %s684 = scalar_lea.sflag [#allocation3], 1
    %685 = vsyncpa %s684, 1
    %686 = vsyncpa [#allocation5], 1
    %s687 = scalar_lea.sflag [#allocation5], 1
    %688 = vsyncpa %s687, 1

</llo_original>
